<compile_context>
chip_gen: v6e
topology: v6e:2x2x1
jax: 0.10.0
libtpu: 0.0.40
codegen_flags: <defaults>
</compile_context>

<pallas_src>
import functools

import jax
import jax.numpy as jnp
import numpy as np
from jax.experimental import pallas as pl
from jax.experimental.pallas import tpu as pltpu

LANE = 128     # lane width -> feature-dim padding target
SUBLANE = 8    # f32 sublane -> graph (batch) dim padding target


def _round_up(x, m):
    return (x + m - 1) // m * m


# ---------------------------------------------------------------------------
# Fused kernel: grid = (layer, node-row tile, k reduction tile over A^T columns)
# ---------------------------------------------------------------------------
def _fused_gine_kernel(at_ref, x0_hbm, w1_ref, b1_ref, w2_ref, b2_ref,
                       scale_ref, m_ref,            # inputs
                       nf_ref, gf_ref,              # outputs
                       acc_ref, xbuf_ref,           # scratch
                       *, tm, tk, at_resident):
    l = pl.program_id(0)
    i = pl.program_id(1)
    k = pl.program_id(2)
    nl = pl.num_programs(0)
    nk = pl.num_programs(2)

    cur = l & 1          # layer parity: read side of the ping-pong activation buffer
    nxt = 1 - cur        # write side (next layer's input)

    # One-time init: stage padded input features (already in matmul dtype) into the
    # resident activation buffer and zero the graph-feature accumulator (its output block
    # index never changes -> VMEM-resident across the whole grid).
    @pl.when((l == 0) & (i == 0) & (k == 0))
    def _init():
        pltpu.sync_copy(x0_hbm, xbuf_ref.at[0])
        gf_ref[...] = jnp.zeros_like(gf_ref)

    @pl.when(k == 0)
    def _zero_acc():
        acc_ref[...] = jnp.zeros_like(acc_ref)

    k_start = pl.multiple_of(k * tk, tk)
    i_start = pl.multiple_of(i * tm, tm)

    # Aggregation partial sum: update[i-tile] += A^T[i-tile, k-tile] @ x[k-tile].
    if at_resident:
        # A^T fully VMEM-resident (tk == Np): slice rows, no per-layer HBM re-stream.
        a_tile = at_ref[pl.ds(i_start, tm), :]
    else:
        a_tile = at_ref[...]
    x_k = xbuf_ref[cur, pl.ds(k_start, tk), :]       # already in matmul dtype (no re-cast)
    acc_ref[...] += jnp.dot(a_tile, x_k, preferred_element_type=jnp.float32)

    # Epilogue once per (layer, row tile): residual + 2-layer MLP + relu, layer hand-off,
    # and (last layer only) node_feature write-back + fused sum readout.
    @pl.when(k == nk - 1)
    def _finish():
        mm_dtype = w1_ref.dtype
        x_i = xbuf_ref[cur, pl.ds(i_start, tm), :].astype(jnp.float32)
        h = scale_ref[0] * x_i + acc_ref[...]         # (1 + eps_l) * x + update   (f32)
        z = jnp.dot(h.astype(mm_dtype), w1_ref[0],
                    preferred_element_type=jnp.float32) + b1_ref[0]
        z = jnp.maximum(z, 0.0)
        out = jnp.dot(z.astype(mm_dtype), w2_ref[0],
                      preferred_element_type=jnp.float32) + b2_ref[0]
        out = jnp.maximum(out, 0.0)

        out_b = out.astype(xbuf_ref.dtype)
        xbuf_ref[nxt, pl.ds(i_start, tm), :] = out_b  # next layer's input (parity write)

        @pl.when(l == nl - 1)
        def _emit():
            nf_ref[...] = out                         # node_feature (last layer only)
            gf_ref[...] += jnp.dot(m_ref[...], out_b, # fused SumReadout
                                   preferred_element_type=jnp.float32)
        # NOTE: padded node rows (N..Np) develop nonzero activations (relu(b1)@W2 + b2);
        # they never contaminate real rows (zero A^T columns, zero readout columns) and
        # are sliced away by the wrapper -- keep A^T / one-hot padding at zero.


# ---------------------------------------------------------------------------
# Wrapper
# ---------------------------------------------------------------------------
def gine_forward(a_t, x, one_hot_batch, params, *, tm=256, tk=None, compute_bf16=True):
    """Full GINE forward (all layers + sum readout) in a single pallas_call."""
    N, d_in = x.shape
    B = one_hot_batch.shape[0]
    L = len(params)
    d_out = params[-1][3].shape[1]        # last layer W2 output dim (concat_hidden=False)

    feat_dims = [d_in]
    for (_, w1, _, w2, _) in params:
        feat_dims += [w1.shape[0], w1.shape[1], w2.shape[0], w2.shape[1]]
    Dp = _round_up(max(feat_dims), LANE)

    tm = max(LANE, _round_up(min(tm, _round_up(N, LANE)), LANE))
    Np = _round_up(N, tm)
    if tk is None or tk >= Np:
        tk = Np                                   # collapse the k grid axis (1 step)
    else:
        tk = max(LANE, _round_up(tk, LANE))
        Np = _round_up(Np, int(np.lcm(tm, tk)))
    Bp = _round_up(B, SUBLANE)

    mm_dtype = jnp.bfloat16 if compute_bf16 else jnp.float32
    item = np.dtype(mm_dtype).itemsize

    # A^T kept fully VMEM-resident when the k axis is collapsed and it fits comfortably.
    at_resident = (tk == Np) and (2 * Np * Np * item <= (24 << 20))

    at_p = jnp.pad(a_t, ((0, Np - N), (0, Np - N))).astype(mm_dtype)         # 0/1 exact
    x_p = jnp.pad(x.astype(jnp.float32), ((0, Np - N), (0, Dp - d_in))).astype(mm_dtype)
    m_p = jnp.pad(one_hot_batch.astype(jnp.float32),
                  ((0, Bp - B), (0, Np - N))).astype(mm_dtype)               # 0/1 exact

    w1s, b1s, w2s, b2s, scales = [], [], [], [], []
    for (eps, w1, b1, w2, b2) in params:
        w1s.append(jnp.pad(w1.astype(jnp.float32),
                           ((0, Dp - w1.shape[0]), (0, Dp - w1.shape[1]))).astype(mm_dtype))
        w2s.append(jnp.pad(w2.astype(jnp.float32),
                           ((0, Dp - w2.shape[0]), (0, Dp - w2.shape[1]))).astype(mm_dtype))
        b1s.append(jnp.pad(b1.astype(jnp.float32), ((0, 0), (0, Dp - b1.shape[1]))))
        b2s.append(jnp.pad(b2.astype(jnp.float32), ((0, 0), (0, Dp - b2.shape[1]))))
        scales.append(jnp.full((1, Dp), 1.0 + eps[0], dtype=jnp.float32))
    w1s = jnp.stack(w1s)        # (L, Dp, Dp)  mm_dtype
    w2s = jnp.stack(w2s)        # (L, Dp, Dp)  mm_dtype
    b1s = jnp.stack(b1s)        # (L, 1, Dp)   f32
    b2s = jnp.stack(b2s)        # (L, 1, Dp)   f32
    scales = jnp.stack(scales)  # (L, 1, Dp)   f32  -> (1 + eps_l) lane vector

    grid = (L, Np // tm, Np // tk)

    if at_resident:
        at_spec = pl.BlockSpec((Np, Np), lambda l, i, k: (0, 0))   # resident, DMA'd once
    else:
        at_spec = pl.BlockSpec((tm, tk), lambda l, i, k: (i, k))   # streamed tiles

    in_specs = [
        at_spec,                                                  # A^T
        pl.BlockSpec(memory_space=pl.ANY),                        # x0 stays in HBM
        pl.BlockSpec((1, Dp, Dp), lambda l, i, k: (l, 0, 0)),     # W1[l]
        pl.BlockSpec((1, 1, Dp), lambda l, i, k: (l, 0, 0)),      # b1[l]
        pl.BlockSpec((1, Dp, Dp), lambda l, i, k: (l, 0, 0)),     # W2[l]
        pl.BlockSpec((1, 1, Dp), lambda l, i, k: (l, 0, 0)),      # b2[l]
        pl.BlockSpec((1, 1, Dp), lambda l, i, k: (l, 0, 0)),      # (1 + eps_l) lanes
        pl.BlockSpec((Bp, tm), lambda l, i, k: (0, i)),           # one-hot readout tile
    ]
    out_specs = [
        pl.BlockSpec((tm, Dp), lambda l, i, k: (i, 0)),           # node_feature
        pl.BlockSpec((Bp, Dp), lambda l, i, k: (0, 0)),           # graph_feature (resident)
    ]
    out_shape = (jax.ShapeDtypeStruct((Np, Dp), jnp.float32),
                 jax.ShapeDtypeStruct((Bp, Dp), jnp.float32))
    scratch_shapes = [
        pltpu.VMEM((tm, Dp), jnp.float32),        # k-reduction (update) accumulator
        pltpu.VMEM((2, Np, Dp), mm_dtype),        # resident activations (ping / pong)
    ]

    # Working-set estimate (double-buffered BlockSpec inputs/outputs counted x2) and a
    # generation-aware scoped-VMEM limit.
    ws = (2 * Np * Dp * item                                    # activation ping-pong
          + tm * Dp * 4                                         # accumulator
          + 2 * (Np * Np if at_resident else tm * tk) * item    # A^T block(s)
          + 2 * 2 * Dp * Dp * item                              # W1 / W2 blocks
          + 2 * 3 * Dp * 4                                      # b1 / b2 / scale blocks
          + 2 * Bp * tm * item                                  # readout one-hot tile
          + 2 * tm * Dp * 4                                     # node_feature out block
          + 2 * Bp * Dp * 4)                                    # graph_feature out block
    try:
        phys_vmem = pltpu.get_tpu_info().vmem_capacity_bytes    # 128 MiB v5e/v6e, 64 MiB v7x
    except Exception:
        phys_vmem = 64 << 20                                    # v7x-safe fallback
    vmem_limit = int(min(max(int(1.5 * ws) + (4 << 20), 32 << 20), int(0.82 * phys_vmem)))

    kernel = functools.partial(_fused_gine_kernel, tm=tm, tk=tk, at_resident=at_resident)
    nf_pad, gf_pad = pl.pallas_call(
        kernel,
        out_shape=out_shape,
        grid_spec=pltpu.PrefetchScalarGridSpec(
            num_scalar_prefetch=0,
            grid=grid,
            in_specs=in_specs,
            out_specs=out_specs,
            scratch_shapes=scratch_shapes),
        compiler_params=pltpu.CompilerParams(
            # Row axis intentionally "arbitrary": the fused design shares the resident
            # activation buffer across layers, so it cannot be sharded across cores.
            dimension_semantics=("arbitrary", "arbitrary", "arbitrary"),
            vmem_limit_bytes=vmem_limit),
    )(at_p, x_p, w1s, b1s, w2s, b2s, scales, m_p)

    node_feature = nf_pad[:N, :d_out]
    graph_feature = gf_pad[:B, :d_out]
    return {"graph_feature": graph_feature, "node_feature": node_feature}


# ---------------------------------------------------------------------------
# Pure-JAX f32 reference (for correctness check)
# ---------------------------------------------------------------------------
def gine_forward_ref(a_t, x, one_hot_batch, params):
    layer_input = x
    for (eps, w1, b1, w2, b2) in params:
        update = a_t @ layer_input
        h = (1.0 + eps[0]) * layer_input + update
        z = jnp.maximum(h @ w1 + b1, 0.0)
        layer_input = jnp.maximum(z @ w2 + b2, 0.0)
    node_feature = layer_input
    graph_feature = one_hot_batch @ node_feature
    return {"graph_feature": graph_feature, "node_feature": node_feature}


# ---------------------------------------------------------------------------
if __name__ == "__main__":
    key = jax.random.PRNGKey(0)

    # Small synthetic batched graph: N nodes, B graphs, D-dim features, 2 GINE layers.
    N, B, D_IN, HIDDEN = 256, 2, 32, 32
    dims = [D_IN, HIDDEN, HIDDEN]              # input_dim=32, hidden_dims=[32, 32]

    k_x, k_e, *k_params = jax.random.split(key, 2 + 4 * (len(dims) - 1))

    # Node features.
    x = jax.random.normal(k_x, (N, D_IN), dtype=jnp.float32)

    # Random sparse-ish adjacency, unit edge weights, no self loops (dense representation).
    adj_mask = (jax.random.uniform(k_e, (N, N)) < 0.15).astype(jnp.float32)
    a = adj_mask * (1.0 - jnp.eye(N, dtype=jnp.float32))
    a_t = a.T                                               # adjacency.t()

    # Batch vector: first half of nodes -> graph 0, rest -> graph 1; one-hot (B, N).
    batch_vec = jnp.concatenate(
        [jnp.zeros((N // 2,), jnp.int32), jnp.ones((N - N // 2,), jnp.int32)])
    one_hot_batch = jnp.asarray(jax.nn.one_hot(batch_vec, B, dtype=jnp.float32).T)

    # Per-layer parameters: W1 (d_in, d_out), b1, W2 (d_out, d_out), b2, eps=0 (learn_eps=False).
    params = []
    for li in range(len(dims) - 1):
        din_l, dout_l = dims[li], dims[li + 1]
        kw1, kb1, kw2, kb2 = k_params[4 * li: 4 * li + 4]
        w1 = jax.random.normal(kw1, (din_l, dout_l), jnp.float32) / np.sqrt(din_l)
        b1 = jax.random.normal(kb1, (1, dout_l), jnp.float32) * 0.01
        w2 = jax.random.normal(kw2, (dout_l, dout_l), jnp.float32) / np.sqrt(dout_l)
        b2 = jax.random.normal(kb2, (1, dout_l), jnp.float32) * 0.01
        eps = jnp.zeros((1,), jnp.float32)
        params.append((eps, w1, b1, w2, b2))

    ref = gine_forward_ref(a_t, x, one_hot_batch, params)

    def rel_err(got, want):
        got = np.asarray(got, np.float64)
        want = np.asarray(want, np.float64)
        return float(np.linalg.norm(got - want) / (np.linalg.norm(want) + 1e-12))

    # Default (bf16 matmul operands, f32 accumulation) path.
    out = gine_forward(a_t, x, one_hot_batch, params)
    jax.block_until_ready(out["node_feature"])
    jax.block_until_ready(out["graph_feature"])
    nf = np.asarray(out["node_feature"])
    gf = np.asarray(out["graph_feature"])
    assert nf.shape == (N, dims[-1]) and gf.shape == (B, dims[-1])
    assert np.all(np.isfinite(nf)) and np.all(np.isfinite(gf))
    assert rel_err(nf, ref["node_feature"]) < 2e-2
    assert rel_err(gf, ref["graph_feature"]) < 2e-2

    # f32 validation path (tight tolerance).
    out32 = gine_forward(a_t, x, one_hot_batch, params, compute_bf16=False)
    jax.block_until_ready(out32["node_feature"])
    assert rel_err(np.asarray(out32["node_feature"]), ref["node_feature"]) < 5e-3
    assert rel_err(np.asarray(out32["graph_feature"]), ref["graph_feature"]) < 5e-3

    print("KERNEL_OK")
</pallas_src>

<mosaic_0001>
module attributes {stable_mosaic.version = 11 : i64} {
  func.func @_fused_gine_kernel(%arg0: i32, %arg1: i32, %arg2: i32, %arg3: memref<256x256xbf16, #tpu.memory_space<vmem>>, %arg4: memref<256x128xbf16, #tpu.memory_space<any>>, %arg5: memref<1x128x128xbf16, #tpu.memory_space<vmem>>, %arg6: memref<1x1x128xf32, #tpu.memory_space<vmem>>, %arg7: memref<1x128x128xbf16, #tpu.memory_space<vmem>>, %arg8: memref<1x1x128xf32, #tpu.memory_space<vmem>>, %arg9: memref<1x1x128xf32, #tpu.memory_space<vmem>>, %arg10: memref<8x256xbf16, #tpu.memory_space<vmem>>, %arg11: memref<256x128xf32, #tpu.memory_space<vmem>>, %arg12: memref<8x128xf32, #tpu.memory_space<vmem>>, %arg13: memref<256x128xf32, #tpu.memory_space<vmem>>, %arg14: memref<2x256x128xbf16, #tpu.memory_space<vmem>>) attributes {dimension_semantics = [#tpu.dimension_semantics<arbitrary>, #tpu.dimension_semantics<arbitrary>, #tpu.dimension_semantics<arbitrary>], iteration_bounds = array<i64: 2, 1, 1>, scalar_prefetch = 0 : i64, scratch_operands = 2 : i64, tpu.core_type = #tpu.core_type<tc>, window_params = [{pipeline_mode = #tpu.pipeline_mode<synchronous>, transform_indices = @transform_0, window_bounds = array<i64: 256, 256>}, {}, {transform_indices = @transform_2, window_bounds = array<i64: 1, 128, 128>}, {transform_indices = @transform_3, window_bounds = array<i64: 1, 1, 128>}, {transform_indices = @transform_4, window_bounds = array<i64: 1, 128, 128>}, {transform_indices = @transform_5, window_bounds = array<i64: 1, 1, 128>}, {transform_indices = @transform_6, window_bounds = array<i64: 1, 1, 128>}, {transform_indices = @transform_7, window_bounds = array<i64: 8, 256>}, {transform_indices = @transform_8, window_bounds = array<i64: 256, 128>}, {pipeline_mode = #tpu.pipeline_mode<synchronous>, transform_indices = @transform_9, window_bounds = array<i64: 8, 128>}]} {
    %c1_i32 = arith.constant 1 : i32
    %0 = arith.andi %arg0, %c1_i32 : i32
    %c1_i32_0 = arith.constant 1 : i32
    %1 = arith.subi %c1_i32_0, %0 : i32
    %c0_i32 = arith.constant 0 : i32
    %2 = arith.cmpi eq, %arg0, %c0_i32 : i32
    %c0_i32_1 = arith.constant 0 : i32
    %3 = arith.cmpi eq, %arg1, %c0_i32_1 : i32
    %4 = arith.andi %2, %3 : i1
    %c0_i32_2 = arith.constant 0 : i32
    %5 = arith.cmpi eq, %arg2, %c0_i32_2 : i32
    %6 = arith.andi %4, %5 : i1
    %7 = arith.extui %6 : i1 to i32
    %c0_i32_3 = arith.constant 0 : i32
    %8 = arith.cmpi ne, %7, %c0_i32_3 : i32
    scf.if %8 {
      %c0_i32_14 = arith.constant 0 : i32
      "tpu.region"() ({
        %31 = tpu.sem_alloc : memref<!tpu.dma_semaphore, #tpu.memory_space<semaphore_mem>>
        %c0_i32_18 = arith.constant 0 : i32
        %c0_i32_19 = arith.constant 0 : i32
        %32 = tpu.memref_slice %arg14[%c0_i32_14, %c0_i32_18, %c0_i32_19] : memref<2x256x128xbf16, #tpu.memory_space<vmem>> -> memref<1x256x128xbf16, #tpu.memory_space<vmem>>
        %33 = tpu.memref_squeeze %32 : memref<1x256x128xbf16, #tpu.memory_space<vmem>> -> memref<256x128xbf16, #tpu.memory_space<vmem>>
        tpu.enqueue_dma source(%arg4 : memref<256x128xbf16, #tpu.memory_space<any>>) target(%33 : memref<256x128xbf16, #tpu.memory_space<vmem>>) target_semaphore(%31 : memref<!tpu.dma_semaphore, #tpu.memory_space<semaphore_mem>>)
        %c0_i32_20 = arith.constant 0 : i32
        %c0_i32_21 = arith.constant 0 : i32
        %34 = tpu.memref_slice %arg14[%c0_i32_14, %c0_i32_20, %c0_i32_21] : memref<2x256x128xbf16, #tpu.memory_space<vmem>> -> memref<1x256x128xbf16, #tpu.memory_space<vmem>>
        %35 = tpu.memref_squeeze %34 : memref<1x256x128xbf16, #tpu.memory_space<vmem>> -> memref<256x128xbf16, #tpu.memory_space<vmem>>
        tpu.wait_dma2 semaphore(%31 : memref<!tpu.dma_semaphore, #tpu.memory_space<semaphore_mem>>) src(%arg4 : memref<256x128xbf16, #tpu.memory_space<any>>) dst(%35 : memref<256x128xbf16, #tpu.memory_space<vmem>>)
        tpu.yield
      }) : () -> ()
      %cst_15 = arith.constant 0.000000e+00 : f32
      %29 = vector.broadcast %cst_15 : f32 to vector<8x128xf32>
      %c0_16 = arith.constant 0 : index
      %c0_17 = arith.constant 0 : index
      %30 = vector.load %arg12[%c0_16, %c0_17] : memref<8x128xf32, #tpu.memory_space<vmem>>, vector<8x128xf32>
      tpu.vector_store %arg12[%c0_16, %c0_17], %29 {strides = array<i32>} : memref<8x128xf32, #tpu.memory_space<vmem>>, vector<8x128xf32>,
    } else {
    }
    %c0_i32_4 = arith.constant 0 : i32
    %9 = arith.cmpi eq, %arg2, %c0_i32_4 : i32
    %10 = arith.extui %9 : i1 to i32
    %c0_i32_5 = arith.constant 0 : i32
    %11 = arith.cmpi ne, %10, %c0_i32_5 : i32
    scf.if %11 {
      %cst_14 = arith.constant 0.000000e+00 : f32
      %29 = vector.broadcast %cst_14 : f32 to vector<256x128xf32>
      %c0_15 = arith.constant 0 : index
      %c0_16 = arith.constant 0 : index
      %30 = vector.load %arg13[%c0_15, %c0_16] : memref<256x128xf32, #tpu.memory_space<vmem>>, vector<256x128xf32>
      tpu.vector_store %arg13[%c0_15, %c0_16], %29 {strides = array<i32>} : memref<256x128xf32, #tpu.memory_space<vmem>>, vector<256x128xf32>,
    } else {
    }
    %c256_i32 = arith.constant 256 : i32
    %12 = arith.muli %arg2, %c256_i32 : i32
    %13 = tpu.assume_multiple %12, 256 : i32
    %c256_i32_6 = arith.constant 256 : i32
    %14 = arith.muli %arg1, %c256_i32_6 : i32
    %15 = tpu.assume_multiple %14, 256 : i32
    %16 = arith.index_cast %15 : i32 to index
    %c0 = arith.constant 0 : index
    %17 = vector.load %arg3[%16, %c0] : memref<256x256xbf16, #tpu.memory_space<vmem>>, vector<256x256xbf16>
    %18 = arith.index_cast %0 : i32 to index
    %19 = arith.index_cast %13 : i32 to index
    %c0_7 = arith.constant 0 : index
    %20 = vector.load %arg14[%18, %19, %c0_7] : memref<2x256x128xbf16, #tpu.memory_space<vmem>>, vector<1x256x128xbf16>
    %21 = vector.shape_cast %20 : vector<1x256x128xbf16> to vector<256x128xbf16>
    %c0_8 = arith.constant 0 : index
    %c0_9 = arith.constant 0 : index
    %22 = vector.load %arg13[%c0_8, %c0_9] : memref<256x128xf32, #tpu.memory_space<vmem>>, vector<256x128xf32>
    %cst = arith.constant dense<0.000000e+00> : vector<256x128xf32>
    %23 = tpu.matmul %17, %21, %cst {dimension_numbers = #tpu.dot_dimension_numbers<[1], [0], [0], [1], [0, 0, 1, 1], [], []>} : vector<256x256xbf16>, vector<256x128xbf16>, vector<256x128xf32> -> vector<256x128xf32>
    %24 = arith.addf %22, %23 : vector<256x128xf32>
    %c0_10 = arith.constant 0 : index
    %c0_11 = arith.constant 0 : index
    %25 = vector.load %arg13[%c0_10, %c0_11] : memref<256x128xf32, #tpu.memory_space<vmem>>, vector<256x128xf32>
    tpu.vector_store %arg13[%c0_10, %c0_11], %24 {strides = array<i32>} : memref<256x128xf32, #tpu.memory_space<vmem>>, vector<256x128xf32>,
    %c0_i32_12 = arith.constant 0 : i32
    %26 = arith.cmpi eq, %arg2, %c0_i32_12 : i32
    %27 = arith.extui %26 : i1 to i32
    %c0_i32_13 = arith.constant 0 : i32
    %28 = arith.cmpi ne, %27, %c0_i32_13 : i32
    scf.if %28 {
      %29 = arith.index_cast %0 : i32 to index
      %30 = arith.index_cast %15 : i32 to index
      %c0_14 = arith.constant 0 : index
      %31 = vector.load %arg14[%29, %30, %c0_14] : memref<2x256x128xbf16, #tpu.memory_space<vmem>>, vector<1x256x128xbf16>
      %32 = vector.shape_cast %31 : vector<1x256x128xbf16> to vector<256x128xbf16>
      %33 = arith.extf %32 : vector<256x128xbf16> to vector<256x128xf32>
      %c0_15 = arith.constant 0 : index
      %c0_16 = arith.constant 0 : index
      %c0_17 = arith.constant 0 : index
      %34 = vector.load %arg9[%c0_15, %c0_16, %c0_17] : memref<1x1x128xf32, #tpu.memory_space<vmem>>, vector<1x1x128xf32>
      %35 = vector.shape_cast %34 : vector<1x1x128xf32> to vector<1x128xf32>
      %36 = vector.broadcast %35 : vector<1x128xf32> to vector<256x128xf32>
      %37 = arith.mulf %36, %33 : vector<256x128xf32>
      %c0_18 = arith.constant 0 : index
      %c0_19 = arith.constant 0 : index
      %38 = vector.load %arg13[%c0_18, %c0_19] : memref<256x128xf32, #tpu.memory_space<vmem>>, vector<256x128xf32>
      %39 = arith.addf %37, %38 : vector<256x128xf32>
      %40 = arith.truncf %39 : vector<256x128xf32> to vector<256x128xbf16>
      %c0_20 = arith.constant 0 : index
      %c0_21 = arith.constant 0 : index
      %c0_22 = arith.constant 0 : index
      %41 = vector.load %arg5[%c0_20, %c0_21, %c0_22] : memref<1x128x128xbf16, #tpu.memory_space<vmem>>, vector<1x128x128xbf16>
      %42 = vector.shape_cast %41 : vector<1x128x128xbf16> to vector<128x128xbf16>
      %cst_23 = arith.constant dense<0.000000e+00> : vector<256x128xf32>
      %43 = tpu.matmul %40, %42, %cst_23 {dimension_numbers = #tpu.dot_dimension_numbers<[1], [0], [0], [1], [0, 0, 1, 1], [], []>} : vector<256x128xbf16>, vector<128x128xbf16>, vector<256x128xf32> -> vector<256x128xf32>
      %c0_24 = arith.constant 0 : index
      %c0_25 = arith.constant 0 : index
      %c0_26 = arith.constant 0 : index
      %44 = vector.load %arg6[%c0_24, %c0_25, %c0_26] : memref<1x1x128xf32, #tpu.memory_space<vmem>>, vector<1x1x128xf32>
      %45 = vector.shape_cast %44 : vector<1x1x128xf32> to vector<1x128xf32>
      %46 = vector.broadcast %45 : vector<1x128xf32> to vector<256x128xf32>
      %47 = arith.addf %43, %46 : vector<256x128xf32>
      %cst_27 = arith.constant 0.000000e+00 : f32
      %48 = vector.broadcast %cst_27 : f32 to vector<256x128xf32>
      %49 = arith.maximumf %47, %48 : vector<256x128xf32>
      %50 = arith.truncf %49 : vector<256x128xf32> to vector<256x128xbf16>
      %c0_28 = arith.constant 0 : index
      %c0_29 = arith.constant 0 : index
      %c0_30 = arith.constant 0 : index
      %51 = vector.load %arg7[%c0_28, %c0_29, %c0_30] : memref<1x128x128xbf16, #tpu.memory_space<vmem>>, vector<1x128x128xbf16>
      %52 = vector.shape_cast %51 : vector<1x128x128xbf16> to vector<128x128xbf16>
      %cst_31 = arith.constant dense<0.000000e+00> : vector<256x128xf32>
      %53 = tpu.matmul %50, %52, %cst_31 {dimension_numbers = #tpu.dot_dimension_numbers<[1], [0], [0], [1], [0, 0, 1, 1], [], []>} : vector<256x128xbf16>, vector<128x128xbf16>, vector<256x128xf32> -> vector<256x128xf32>
      %c0_32 = arith.constant 0 : index
      %c0_33 = arith.constant 0 : index
      %c0_34 = arith.constant 0 : index
      %54 = vector.load %arg8[%c0_32, %c0_33, %c0_34] : memref<1x1x128xf32, #tpu.memory_space<vmem>>, vector<1x1x128xf32>
      %55 = vector.shape_cast %54 : vector<1x1x128xf32> to vector<1x128xf32>
      %56 = vector.broadcast %55 : vector<1x128xf32> to vector<256x128xf32>
      %57 = arith.addf %53, %56 : vector<256x128xf32>
      %cst_35 = arith.constant 0.000000e+00 : f32
      %58 = vector.broadcast %cst_35 : f32 to vector<256x128xf32>
      %59 = arith.maximumf %57, %58 : vector<256x128xf32>
      %60 = arith.truncf %59 : vector<256x128xf32> to vector<256x128xbf16>
      %61 = arith.index_cast %1 : i32 to index
      %62 = arith.index_cast %15 : i32 to index
      %c0_36 = arith.constant 0 : index
      %63 = vector.load %arg14[%61, %62, %c0_36] : memref<2x256x128xbf16, #tpu.memory_space<vmem>>, vector<1x256x128xbf16>
      %64 = vector.shape_cast %63 : vector<1x256x128xbf16> to vector<256x128xbf16>
      %65 = vector.shape_cast %60 : vector<256x128xbf16> to vector<1x256x128xbf16>
      tpu.vector_store %arg14[%61, %62, %c0_36], %65 {strides = array<i32>} : memref<2x256x128xbf16, #tpu.memory_space<vmem>>, vector<1x256x128xbf16>,
      %c1_i32_37 = arith.constant 1 : i32
      %66 = arith.cmpi eq, %arg0, %c1_i32_37 : i32
      %67 = arith.extui %66 : i1 to i32
      %c0_i32_38 = arith.constant 0 : i32
      %68 = arith.cmpi ne, %67, %c0_i32_38 : i32
      scf.if %68 {
        %c0_39 = arith.constant 0 : index
        %c0_40 = arith.constant 0 : index
        %69 = vector.load %arg11[%c0_39, %c0_40] : memref<256x128xf32, #tpu.memory_space<vmem>>, vector<256x128xf32>
        tpu.vector_store %arg11[%c0_39, %c0_40], %59 {strides = array<i32>} : memref<256x128xf32, #tpu.memory_space<vmem>>, vector<256x128xf32>,
        %c0_41 = arith.constant 0 : index
        %c0_42 = arith.constant 0 : index
        %70 = vector.load %arg12[%c0_41, %c0_42] : memref<8x128xf32, #tpu.memory_space<vmem>>, vector<8x128xf32>
        %c0_43 = arith.constant 0 : index
        %c0_44 = arith.constant 0 : index
        %71 = vector.load %arg10[%c0_43, %c0_44] : memref<8x256xbf16, #tpu.memory_space<vmem>>, vector<8x256xbf16>
        %cst_45 = arith.constant dense<0.000000e+00> : vector<8x128xf32>
        %72 = tpu.matmul %71, %60, %cst_45 {dimension_numbers = #tpu.dot_dimension_numbers<[1], [0], [0], [1], [0, 0, 1, 1], [], []>} : vector<8x256xbf16>, vector<256x128xbf16>, vector<8x128xf32> -> vector<8x128xf32>
        %73 = arith.addf %70, %72 : vector<8x128xf32>
        %c0_46 = arith.constant 0 : index
        %c0_47 = arith.constant 0 : index
        %74 = vector.load %arg12[%c0_46, %c0_47] : memref<8x128xf32, #tpu.memory_space<vmem>>, vector<8x128xf32>
        tpu.vector_store %arg12[%c0_46, %c0_47], %73 {strides = array<i32>} : memref<8x128xf32, #tpu.memory_space<vmem>>, vector<8x128xf32>,
      } else {
      }
    } else {
    }
    return
  }
  func.func @transform_0(%arg0: i32, %arg1: i32, %arg2: i32) -> (i32, i32) {
    %c0_i32 = arith.constant 0 : i32
    %c0_i32_0 = arith.constant 0 : i32
    %c0_i32_1 = arith.constant 0 : i32
    return %c0_i32, %c0_i32_0 : i32, i32
  }
  func.func @transform_2(%arg0: i32, %arg1: i32, %arg2: i32) -> (i32, i32, i32) {
    %c0_i32 = arith.constant 0 : i32
    %c0_i32_0 = arith.constant 0 : i32
    %c0_i32_1 = arith.constant 0 : i32
    return %arg0, %c0_i32, %c0_i32_0 : i32, i32, i32
  }
  func.func @transform_3(%arg0: i32, %arg1: i32, %arg2: i32) -> (i32, i32, i32) {
    %c0_i32 = arith.constant 0 : i32
    %c0_i32_0 = arith.constant 0 : i32
    %c0_i32_1 = arith.constant 0 : i32
    return %arg0, %c0_i32, %c0_i32_0 : i32, i32, i32
  }
  func.func @transform_4(%arg0: i32, %arg1: i32, %arg2: i32) -> (i32, i32, i32) {
    %c0_i32 = arith.constant 0 : i32
    %c0_i32_0 = arith.constant 0 : i32
    %c0_i32_1 = arith.constant 0 : i32
    return %arg0, %c0_i32, %c0_i32_0 : i32, i32, i32
  }
  func.func @transform_5(%arg0: i32, %arg1: i32, %arg2: i32) -> (i32, i32, i32) {
    %c0_i32 = arith.constant 0 : i32
    %c0_i32_0 = arith.constant 0 : i32
    %c0_i32_1 = arith.constant 0 : i32
    return %arg0, %c0_i32, %c0_i32_0 : i32, i32, i32
  }
  func.func @transform_6(%arg0: i32, %arg1: i32, %arg2: i32) -> (i32, i32, i32) {
    %c0_i32 = arith.constant 0 : i32
    %c0_i32_0 = arith.constant 0 : i32
    %c0_i32_1 = arith.constant 0 : i32
    return %arg0, %c0_i32, %c0_i32_0 : i32, i32, i32
  }
  func.func @transform_7(%arg0: i32, %arg1: i32, %arg2: i32) -> (i32, i32) {
    %c0_i32 = arith.constant 0 : i32
    %c0_i32_0 = arith.constant 0 : i32
    return %c0_i32, %arg1 : i32, i32
  }
  func.func @transform_8(%arg0: i32, %arg1: i32, %arg2: i32) -> (i32, i32) {
    %c0_i32 = arith.constant 0 : i32
    %c0_i32_0 = arith.constant 0 : i32
    return %arg1, %c0_i32 : i32, i32
  }
  func.func @transform_9(%arg0: i32, %arg1: i32, %arg2: i32) -> (i32, i32) {
    %c0_i32 = arith.constant 0 : i32
    %c0_i32_0 = arith.constant 0 : i32
    %c0_i32_1 = arith.constant 0 : i32
    return %c0_i32, %c0_i32_0 : i32, i32
  }
}

</mosaic_0001>

<llo_original>
// kernel: tpu_custom_call.1
$region0: #{tpu_custom_call.1}
  #allocation0 [shape = 'u32[]', space=smem, size = 0x4, offset = 0x4, fixed_abs, tag = 'smem constant byte address 0x4 - core index']
  #allocation1 [shape = 'u32[144,128]{1,0:T(1,128)}', space=vmem, size = 0x12000, scoped, tag = 'internal scratch']
  #allocation2 [shape = 'f32[256,128]{1,0:T(8,128)}', space=vmem, size = 0x20000, scoped, tag = 'scratch operand']
  #allocation3 [shape = 'bf16[2,256,128]{2,1,0:T(8,128)(2,1)}', space=vmem, size = 0x20000, scoped, tag = 'scratch operand']
  #allocation16 [shape = 's32[]', space=sflag, size = 0x4, offset = 0, fixed_abs, tag = 'sflag constant byte address 0x0 - dummy sync flag']
  #allocation17 [shape = 's32[]', space=sflag, size = 0x4, offset = 0, fixed_abs, tag = 'sflag constant byte address 0x0 - dummy sync flag']
  #allocation18 [shape = 'u32[]', space=smem, size = 0x4, offset = 0x44, fixed_abs, tag = 'smem constant byte address 0x44 - assertion arg 0']
  #allocation19 [shape = 'u32[]', space=smem, size = 0x4, offset = 0x48, fixed_abs, tag = 'smem constant byte address 0x48 - assertion arg 1']
  %s0 = inlined_call_operand.hbm [shape: bf16[256,256], index: 0, kind: input, shape index: {}]
  %s1 = inlined_call_operand.hbm [shape: bf16[256,128], index: 1, kind: input, shape index: {}]
  %s2 = inlined_call_operand.hbm [shape: bf16[2,128,128], index: 2, kind: input, shape index: {}]
  %s3 = inlined_call_operand.vmem [shape: f32[2,1,128], index: 3, kind: input, shape index: {}]
  %s4 = inlined_call_operand.hbm [shape: bf16[2,128,128], index: 4, kind: input, shape index: {}]
  %s5 = inlined_call_operand.vmem [shape: f32[2,1,128], index: 5, kind: input, shape index: {}]
  %s6 = inlined_call_operand.hbm [shape: f32[2,1,128], index: 6, kind: input, shape index: {}]
  %s7 = inlined_call_operand.vmem [shape: bf16[8,256], index: 7, kind: input, shape index: {}]
  %s8 = inlined_call_operand.hbm [shape: f32[256,128], index: 8, kind: output, shape index: {0}]
  %s9 = inlined_call_operand.hbm [shape: f32[8,128], index: 9, kind: output, shape index: {1}]
  %10 = xla_tuple %s8, %s9
  %s11 = sld [smem:[#allocation0]]
  $region106: #{tpu_custom_call.1} parent=0
    _
  %s13 = ssub.s32 1, %s11
  %s14 = scalar_select 0, %s13, %s11
  $region1: #{tpu_custom_call.1} parent=0
    #allocation4 [shape = 'u8[131072]{0}', space=vmem, size = 0x20000, scoped, tag = 'input window, operand 0, single buffered']
    #allocation5 [shape = 's32[2]{0}', space=sflag, size = 0x8, scoped, tag = 'scoped memory for tpu_custom_call.1']
    #allocation6 [shape = 's32[2]{0}', space=sflag, size = 0x8, scoped, tag = 'scoped memory for tpu_custom_call.1']
    #allocation7 [shape = 'u8[65536]{0}', space=vmem, size = 0x10000, scoped, tag = 'input window, operand 2']
    #allocation8 [shape = 's32[2]{0}', space=sflag, size = 0x8, scoped, tag = 'scoped memory for tpu_custom_call.1']
    #allocation9 [shape = 'u8[65536]{0}', space=vmem, size = 0x10000, scoped, tag = 'input window, operand 4']
    #allocation10 [shape = 'u8[1024]{0}', space=vmem, size = 0x400, scoped, tag = 'input window, operand 6']
    #allocation11 [shape = 's32[2]{0}', space=sflag, size = 0x8, scoped, tag = 'scoped memory for tpu_custom_call.1']
    #allocation12 [shape = 'u8[131072]{0}', space=vmem, size = 0x20000, scoped, tag = 'output window, operand 0, single buffered']
    #allocation13 [shape = 'u8[4096]{0}', space=vmem, size = 0x1000, scoped, tag = 'output window, operand 1, single buffered']
    #allocation14 [shape = 's32[1]{0}', space=sflag, size = 0x4, scoped, tag = 'scoped memory for tpu_custom_call.1']
    %15 = vsyncpa [#allocation5], 0
    %16 = vsyncpa [#allocation8], 0
    %s17 = scalar_lea.sflag [#allocation8], 1
    %18 = vsyncpa %s17, 0
    %19 = vsyncpa [#allocation11], 0
    %s20 = scalar_lea.sflag [#allocation11], 1
    %21 = vsyncpa %s20, 0
    %22 = vsyncpa [#allocation6], 0
    %23 = vsyncpa [#allocation14], 0
    loop: start=0, step=1, limit=4
    $region2: #{tpu_custom_call.1} parent=1 // loop_pre_header
      _
    $region3: #{tpu_custom_call.1} parent=1 // loop_header
      %s25 = sphi 0, %s29
      %p26 = scmp.ge.s32.totalorder %s25, 4
      %s32 = sphi 0, %s51
      %s33 = sphi 0, %s47
      %s34 = sphi 0, %s43
      %s35 = sphi 0, %s32
      %s36 = sphi 0, %s33
      %s37 = sphi 0, %s34
      %s38 = sphi 0, %s35
      %s39 = sphi 0, %s36
      %s40 = sphi 0, %s37
      %s52 = sphi 0, %s52
      %s54 = sphi 0, %s52
      %s55 = sphi 0, %s54
      %s69 = sphi 0, %s55
      %s75 = sphi 0, %s77
      %s78 = sphi 0, %s75
      %s79 = sphi 0, %s78
      %s95 = sphi 0, %s79
      %s101 = sphi 0, %s103
      %s104 = sphi 0, %s101
      %s105 = sphi 0, %s104
      %s121 = sphi 0, %s105
      %s127 = sphi 0, %s129
      %s130 = sphi 0, %s127
      %s131 = sphi 0, %s130
      %s147 = sphi 0, %s131
      %s153 = sphi 0, %s155
      %s156 = sphi 0, %s153
      %s157 = sphi 0, %s156
      %s173 = sphi 0, %s157
      %s179 = sphi 0, %s181
      %s182 = sphi 0, %s179
      %s183 = sphi 0, %s182
      %s199 = sphi 0, %s183
      %s205 = sphi 0, %s207
      %s208 = sphi 0, %s205
      %s209 = sphi 0, %s208
      %s225 = sphi 0, %s209
      %s231 = sphi 0, %s233
      %s234 = sphi 0, %s231
      %s235 = sphi 0, %s234
      %s251 = sphi 0, %s235
      %s255 = sphi 0, %s255
      %s257 = sphi 0, %s255
      %s258 = sphi 0, %s257
      %s272 = sphi 0, %s258
    $region4: #{tpu_custom_call.1} parent=1 // loop_header_branch
      %28 = sbr.rel (%p26) target = $region8
    $region5: #{tpu_custom_call.1} parent=1 // loop_body
      %s30 = ssub.s32 %s25, 1
      %s31 = ssub.s32 %s25, 2
      %s41 = sadd.s32 1, %s34
      %p42 = scmp.ge.s32.totalorder %s41, 1
      %s43 = scalar_select %p42, 0, %s41
      %s44 = sadd.s32 1, %s33
      %s45 = scalar_select %p42, %s44, %s33
      %p46 = scmp.ge.s32.totalorder %s45, 1
      %s47 = scalar_select %p46, 0, %s45
      %s48 = sadd.s32 1, %s32
      %s49 = scalar_select %p46, %s48, %s32
      %p50 = scmp.ge.s32.totalorder %s49, 2
      %s51 = scalar_select %p50, 0, %s49
      %s53 = sadd.s32 %s52, 1
      %p56 = scmp.eq.s32.totalorder %s25, 1
      %p57 = scmp.ne.s32.totalorder %s52, %s54
      %p58 = scmp.eq.s32.totalorder %s25, 0
      %p59 = por %p57, %p58
      %p60 = scmp.ne.s32.totalorder %s52, %s54
      %p61 = scmp.eq.s32.totalorder %s30, 1
      %p62 = por %p60, %p61
      %p63 = scmp.ne.s32.totalorder %s54, %s55
      %p64 = scmp.eq.s32.totalorder %s30, 0
      %p65 = por %p63, %p64
      %p66 = scmp.ne.s32.totalorder %s54, %s55
      %p67 = scmp.eq.s32.totalorder %s31, 1
      %p68 = por %p66, %p67
      %p70 = scmp.ne.s32.totalorder %s55, %s69
      %p71 = scmp.eq.s32.totalorder %s31, 0
      %p72 = por %p70, %p71
      %s73 = ssub.s32 %s32, %s51
      %p74 = scmp.eq.s32.totalorder %s73, 0
      %s76 = sadd.s32 %s75, 1
      %s77 = scalar_select %p74, %s75, %s76
      %p80 = pneg %p74
      %p81 = scmp.eq.s32.totalorder %s25, 1
      %p82 = por %p80, %p81
      %p83 = scmp.ne.s32.totalorder %s75, %s78
      %p84 = scmp.eq.s32.totalorder %s25, 0
      %p85 = por %p83, %p84
      %p86 = scmp.ne.s32.totalorder %s75, %s78
      %p87 = scmp.eq.s32.totalorder %s30, 1
      %p88 = por %p86, %p87
      %p89 = scmp.ne.s32.totalorder %s78, %s79
      %p90 = scmp.eq.s32.totalorder %s30, 0
      %p91 = por %p89, %p90
      %p92 = scmp.ne.s32.totalorder %s78, %s79
      %p93 = scmp.eq.s32.totalorder %s31, 1
      %p94 = por %p92, %p93
      %p96 = scmp.ne.s32.totalorder %s79, %s95
      %p97 = scmp.eq.s32.totalorder %s31, 0
      %p98 = por %p96, %p97
      %s99 = ssub.s32 %s32, %s51
      %p100 = scmp.eq.s32.totalorder %s99, 0
      %s102 = sadd.s32 %s101, 1
      %s103 = scalar_select %p100, %s101, %s102
      %p106 = pneg %p100
      %p107 = scmp.eq.s32.totalorder %s25, 1
      %p108 = por %p106, %p107
      %p109 = scmp.ne.s32.totalorder %s101, %s104
      %p110 = scmp.eq.s32.totalorder %s25, 0
      %p111 = por %p109, %p110
      %p112 = scmp.ne.s32.totalorder %s101, %s104
      %p113 = scmp.eq.s32.totalorder %s30, 1
      %p114 = por %p112, %p113
      %p115 = scmp.ne.s32.totalorder %s104, %s105
      %p116 = scmp.eq.s32.totalorder %s30, 0
      %p117 = por %p115, %p116
      %p118 = scmp.ne.s32.totalorder %s104, %s105
      %p119 = scmp.eq.s32.totalorder %s31, 1
      %p120 = por %p118, %p119
      %p122 = scmp.ne.s32.totalorder %s105, %s121
      %p123 = scmp.eq.s32.totalorder %s31, 0
      %p124 = por %p122, %p123
      %s125 = ssub.s32 %s32, %s51
      %p126 = scmp.eq.s32.totalorder %s125, 0
      %s128 = sadd.s32 %s127, 1
      %s129 = scalar_select %p126, %s127, %s128
      %p132 = pneg %p126
      %p133 = scmp.eq.s32.totalorder %s25, 1
      %p134 = por %p132, %p133
      %p135 = scmp.ne.s32.totalorder %s127, %s130
      %p136 = scmp.eq.s32.totalorder %s25, 0
      %p137 = por %p135, %p136
      %p138 = scmp.ne.s32.totalorder %s127, %s130
      %p139 = scmp.eq.s32.totalorder %s30, 1
      %p140 = por %p138, %p139
      %p141 = scmp.ne.s32.totalorder %s130, %s131
      %p142 = scmp.eq.s32.totalorder %s30, 0
      %p143 = por %p141, %p142
      %p144 = scmp.ne.s32.totalorder %s130, %s131
      %p145 = scmp.eq.s32.totalorder %s31, 1
      %p146 = por %p144, %p145
      %p148 = scmp.ne.s32.totalorder %s131, %s147
      %p149 = scmp.eq.s32.totalorder %s31, 0
      %p150 = por %p148, %p149
      %s151 = ssub.s32 %s32, %s51
      %p152 = scmp.eq.s32.totalorder %s151, 0
      %s154 = sadd.s32 %s153, 1
      %s155 = scalar_select %p152, %s153, %s154
      %p158 = pneg %p152
      %p159 = scmp.eq.s32.totalorder %s25, 1
      %p160 = por %p158, %p159
      %p161 = scmp.ne.s32.totalorder %s153, %s156
      %p162 = scmp.eq.s32.totalorder %s25, 0
      %p163 = por %p161, %p162
      %p164 = scmp.ne.s32.totalorder %s153, %s156
      %p165 = scmp.eq.s32.totalorder %s30, 1
      %p166 = por %p164, %p165
      %p167 = scmp.ne.s32.totalorder %s156, %s157
      %p168 = scmp.eq.s32.totalorder %s30, 0
      %p169 = por %p167, %p168
      %p170 = scmp.ne.s32.totalorder %s156, %s157
      %p171 = scmp.eq.s32.totalorder %s31, 1
      %p172 = por %p170, %p171
      %p174 = scmp.ne.s32.totalorder %s157, %s173
      %p175 = scmp.eq.s32.totalorder %s31, 0
      %p176 = por %p174, %p175
      %s177 = ssub.s32 %s32, %s51
      %p178 = scmp.eq.s32.totalorder %s177, 0
      %s180 = sadd.s32 %s179, 1
      %s181 = scalar_select %p178, %s179, %s180
      %p184 = pneg %p178
      %p185 = scmp.eq.s32.totalorder %s25, 1
      %p186 = por %p184, %p185
      %p187 = scmp.ne.s32.totalorder %s179, %s182
      %p188 = scmp.eq.s32.totalorder %s25, 0
      %p189 = por %p187, %p188
      %p190 = scmp.ne.s32.totalorder %s179, %s182
      %p191 = scmp.eq.s32.totalorder %s30, 1
      %p192 = por %p190, %p191
      %p193 = scmp.ne.s32.totalorder %s182, %s183
      %p194 = scmp.eq.s32.totalorder %s30, 0
      %p195 = por %p193, %p194
      %p196 = scmp.ne.s32.totalorder %s182, %s183
      %p197 = scmp.eq.s32.totalorder %s31, 1
      %p198 = por %p196, %p197
      %p200 = scmp.ne.s32.totalorder %s183, %s199
      %p201 = scmp.eq.s32.totalorder %s31, 0
      %p202 = por %p200, %p201
      %s203 = ssub.s32 %s33, %s47
      %p204 = scmp.eq.s32.totalorder %s203, 0
      %s206 = sadd.s32 %s205, 1
      %s207 = scalar_select %p204, %s205, %s206
      %p210 = pneg %p204
      %p211 = scmp.eq.s32.totalorder %s25, 1
      %p212 = por %p210, %p211
      %p213 = scmp.ne.s32.totalorder %s205, %s208
      %p214 = scmp.eq.s32.totalorder %s25, 0
      %p215 = por %p213, %p214
      %p216 = scmp.ne.s32.totalorder %s205, %s208
      %p217 = scmp.eq.s32.totalorder %s30, 1
      %p218 = por %p216, %p217
      %p219 = scmp.ne.s32.totalorder %s208, %s209
      %p220 = scmp.eq.s32.totalorder %s30, 0
      %p221 = por %p219, %p220
      %p222 = scmp.ne.s32.totalorder %s208, %s209
      %p223 = scmp.eq.s32.totalorder %s31, 1
      %p224 = por %p222, %p223
      %p226 = scmp.ne.s32.totalorder %s209, %s225
      %p227 = scmp.eq.s32.totalorder %s31, 0
      %p228 = por %p226, %p227
      %s229 = ssub.s32 %s33, %s47
      %p230 = scmp.eq.s32.totalorder %s229, 0
      %s232 = sadd.s32 %s231, 1
      %s233 = scalar_select %p230, %s231, %s232
      %p236 = pneg %p230
      %p237 = scmp.eq.s32.totalorder %s25, 1
      %p238 = por %p236, %p237
      %p239 = scmp.ne.s32.totalorder %s231, %s234
      %p240 = scmp.eq.s32.totalorder %s25, 0
      %p241 = por %p239, %p240
      %p242 = scmp.ne.s32.totalorder %s231, %s234
      %p243 = scmp.eq.s32.totalorder %s30, 1
      %p244 = por %p242, %p243
      %p245 = scmp.ne.s32.totalorder %s234, %s235
      %p246 = scmp.eq.s32.totalorder %s30, 0
      %p247 = por %p245, %p246
      %p248 = scmp.ne.s32.totalorder %s234, %s235
      %p249 = scmp.eq.s32.totalorder %s31, 1
      %p250 = por %p248, %p249
      %p252 = scmp.ne.s32.totalorder %s235, %s251
      %p253 = scmp.eq.s32.totalorder %s31, 0
      %p254 = por %p252, %p253
      %s256 = sadd.s32 %s255, 1
      %p259 = scmp.eq.s32.totalorder %s25, 1
      %p260 = scmp.ne.s32.totalorder %s255, %s257
      %p261 = scmp.eq.s32.totalorder %s25, 0
      %p262 = por %p260, %p261
      %p263 = scmp.ne.s32.totalorder %s255, %s257
      %p264 = scmp.eq.s32.totalorder %s30, 1
      %p265 = por %p263, %p264
      %p266 = scmp.ne.s32.totalorder %s257, %s258
      %p267 = scmp.eq.s32.totalorder %s30, 0
      %p268 = por %p266, %p267
      %p269 = scmp.ne.s32.totalorder %s257, %s258
      %p270 = scmp.eq.s32.totalorder %s31, 1
      %p271 = por %p269, %p270
      %p273 = scmp.ne.s32.totalorder %s258, %s272
      %p274 = scmp.eq.s32.totalorder %s31, 0
      %p275 = por %p273, %p274
      %p276 = scmp.le.s32.totalorder 1, %s25
      %p277 = scmp.lt.s32.totalorder %s25, 3
      %p278 = pnand %p276, %p277
      %p279 = pneg %p278
      // Predicated region
      $region9: #{tpu_custom_call.1} parent=5 // pred_check
        _
      $region10: #{tpu_custom_call.1} parent=5 // pred_check_branch
        %281 = sbr.rel (%p278) target = $region12
      $region11: #{tpu_custom_call.1} parent=5 // pred_region
        %s282 = ssub.s32 %s25, 1
        // Predicated region
        $region13: #{tpu_custom_call.1} parent=11 // pred_check
          %p283 = pneg %p65
        $region14: #{tpu_custom_call.1} parent=11 // pred_check_branch
          %285 = sbr.rel (%p283) target = $region16
        $region15: #{tpu_custom_call.1} parent=11 // pred_region
          %s287 = ssub.s32 4096, 4096
          %288 = vsyncadd [#allocation5], %s287
          %s289 = sshll.u32 [#allocation4], 4
          %s290 = int_to_ptr.vmem [resolvable:$true] %s289
          %295 = dma.hbm_to_vmem [thread:$0]  %s0, 4096, %s290, [#allocation5], 128, 128, 8
        $region16: #{tpu_custom_call.1} parent=11 // pred_fallthru
          _
        // Predicated region
        $region17: #{tpu_custom_call.1} parent=11 // pred_check
          %p296 = pneg %p221
        $region18: #{tpu_custom_call.1} parent=11 // pred_check_branch
          %298 = sbr.rel (%p296) target = $region20
        $region19: #{tpu_custom_call.1} parent=11 // pred_region
          %s299 = smul.u32 2, %s36
          %p300 = scmp.lt.s32.totalorder %s299, 1
          %s301 = scalar_select %p300, %s299, 1
          %s302 = smul.addr %s301, 4
          %s303 = scalar_lea.vmem %s7, %s302
          %s304 = smul.u32 2, %s36
        $region20: #{tpu_custom_call.1} parent=11 // pred_fallthru
          _
      $region12: #{tpu_custom_call.1} parent=5 // pred_fallthru
        _
      %p305 = scmp.lt.s32.totalorder %s25, 2
      // Predicated region
      $region21: #{tpu_custom_call.1} parent=5 // pred_check
        %p306 = pneg %p305
      $region22: #{tpu_custom_call.1} parent=5 // pred_check_branch
        %308 = sbr.rel (%p306) target = $region24
      $region23: #{tpu_custom_call.1} parent=5 // pred_region
        // Predicated region
        $region25: #{tpu_custom_call.1} parent=23 // pred_check
          %p309 = pneg %p85
        $region26: #{tpu_custom_call.1} parent=23 // pred_check_branch
          %311 = sbr.rel (%p309) target = $region28
        $region27: #{tpu_custom_call.1} parent=23 // pred_region
          %s312 = sand.u32 %s25, 1
          %s313 = scalar_lea.sflag [#allocation8], %s312
          %s314 = sand.u32 %s75, 1
          %s315 = smul.addr %s314, 64
          %s316 = scalar_lea.vmem [#allocation7], %s315
          %s318 = ssub.s32 1024, 1024
          %319 = vsyncadd %s313, %s318
          %s320 = smul.addr %s32, 16
          %s321 = smul.addr %s320, 64
          %s322 = scalar_lea.hbm %s2, %s321
          %s323 = sshll.u32 %s316, 4
          %s324 = int_to_ptr.vmem [resolvable:$true] %s323
          %329 = dma.hbm_to_vmem [thread:$0]  %s322, 1024, %s324, %s313, 64, 64, 4
        $region28: #{tpu_custom_call.1} parent=23 // pred_fallthru
          _
        // Predicated region
        $region29: #{tpu_custom_call.1} parent=23 // pred_check
          %p330 = pneg %p111
        $region30: #{tpu_custom_call.1} parent=23 // pred_check_branch
          %332 = sbr.rel (%p330) target = $region32
        $region31: #{tpu_custom_call.1} parent=23 // pred_region
          %p333 = scmp.lt.s32.totalorder %s32, 1
          %s334 = scalar_select %p333, %s32, 1
          %s335 = scalar_lea.vmem %s3, %s334
        $region32: #{tpu_custom_call.1} parent=23 // pred_fallthru
          _
        // Predicated region
        $region33: #{tpu_custom_call.1} parent=23 // pred_check
          %p336 = pneg %p137
        $region34: #{tpu_custom_call.1} parent=23 // pred_check_branch
          %338 = sbr.rel (%p336) target = $region36
        $region35: #{tpu_custom_call.1} parent=23 // pred_region
          %s339 = sand.u32 %s25, 1
          %s340 = scalar_lea.sflag [#allocation8], %s339
          %s341 = sand.u32 %s127, 1
          %s342 = smul.addr %s341, 64
          %s343 = scalar_lea.vmem [#allocation9], %s342
          %s345 = ssub.s32 1024, 1024
          %346 = vsyncadd %s340, %s345
          %s347 = smul.addr %s32, 16
          %s348 = smul.addr %s347, 64
          %s349 = scalar_lea.hbm %s4, %s348
          %s350 = sshll.u32 %s343, 4
          %s351 = int_to_ptr.vmem [resolvable:$true] %s350
          %356 = dma.hbm_to_vmem [thread:$0]  %s349, 1024, %s351, %s340, 64, 64, 4
        $region36: #{tpu_custom_call.1} parent=23 // pred_fallthru
          _
        // Predicated region
        $region37: #{tpu_custom_call.1} parent=23 // pred_check
          %p357 = pneg %p163
        $region38: #{tpu_custom_call.1} parent=23 // pred_check_branch
          %359 = sbr.rel (%p357) target = $region40
        $region39: #{tpu_custom_call.1} parent=23 // pred_region
          %p360 = scmp.lt.s32.totalorder %s32, 1
          %s361 = scalar_select %p360, %s32, 1
          %s362 = scalar_lea.vmem %s5, %s361
        $region40: #{tpu_custom_call.1} parent=23 // pred_fallthru
          _
        // Predicated region
        $region41: #{tpu_custom_call.1} parent=23 // pred_check
          %p363 = pneg %p189
        $region42: #{tpu_custom_call.1} parent=23 // pred_check_branch
          %365 = sbr.rel (%p363) target = $region44
        $region43: #{tpu_custom_call.1} parent=23 // pred_region
          %s366 = sand.u32 %s179, 1
          %s367 = scalar_lea.sflag [#allocation11], %s366
          %s368 = sand.u32 %s179, 1
          %s369 = scalar_lea.vmem [#allocation10], %s368
          %s371 = ssub.s32 16, 16
          %372 = vsyncadd %s367, %s371
          %s373 = smul.addr %s32, 16
          %s374 = scalar_lea.hbm %s6, %s373
          %s376 = sshll.u32 %s369, 4
          %s377 = int_to_ptr.vmem [resolvable:$true] %s376
          %379 = dma.hbm_to_vmem [thread:$0]  %s374, 16, %s377, %s367
        $region44: #{tpu_custom_call.1} parent=23 // pred_fallthru
          _
      $region24: #{tpu_custom_call.1} parent=5 // pred_fallthru
        _
      %p380 = scmp.le.s32.totalorder 1, %s25
      %p381 = scmp.lt.s32.totalorder %s25, 3
      %p382 = pnand %p380, %p381
      %p383 = pneg %p382
      // Predicated region
      $region45: #{tpu_custom_call.1} parent=5 // pred_check
        _
      $region46: #{tpu_custom_call.1} parent=5 // pred_check_branch
        %385 = sbr.rel (%p382) target = $region48
      $region47: #{tpu_custom_call.1} parent=5 // pred_region
        %s386 = ssub.s32 %s25, 1
        // Predicated region
        $region49: #{tpu_custom_call.1} parent=47 // pred_check
          %p387 = pneg %p65
        $region50: #{tpu_custom_call.1} parent=47 // pred_check_branch
          %389 = sbr.rel (%p387) target = $region52
        $region51: #{tpu_custom_call.1} parent=47 // pred_region
          %390 = dma.done [#allocation5], 4096
        $region52: #{tpu_custom_call.1} parent=47 // pred_fallthru
          _
        %s391 = sand.u32 %s30, 1
        %s392 = scalar_lea.sflag [#allocation8], %s391
        %s393 = sand.u32 %s78, 1
        %s394 = smul.addr %s393, 64
        %s395 = scalar_lea.vmem [#allocation7], %s394
        // Predicated region
        $region53: #{tpu_custom_call.1} parent=47 // pred_check
          %p396 = pneg %p91
        $region54: #{tpu_custom_call.1} parent=47 // pred_check_branch
          %398 = sbr.rel (%p396) target = $region56
        $region55: #{tpu_custom_call.1} parent=47 // pred_region
          %399 = dma.done %s392, 1024
        $region56: #{tpu_custom_call.1} parent=47 // pred_fallthru
          _
        %s400 = sand.u32 %s30, 1
        %s401 = scalar_lea.sflag [#allocation8], %s400
        %s402 = sand.u32 %s130, 1
        %s403 = smul.addr %s402, 64
        %s404 = scalar_lea.vmem [#allocation9], %s403
        // Predicated region
        $region57: #{tpu_custom_call.1} parent=47 // pred_check
          %p405 = pneg %p143
        $region58: #{tpu_custom_call.1} parent=47 // pred_check_branch
          %407 = sbr.rel (%p405) target = $region60
        $region59: #{tpu_custom_call.1} parent=47 // pred_region
          %408 = dma.done %s401, 1024
        $region60: #{tpu_custom_call.1} parent=47 // pred_fallthru
          _
        %s409 = sand.u32 %s182, 1
        %s410 = scalar_lea.sflag [#allocation11], %s409
        %s411 = sand.u32 %s182, 1
        %s412 = scalar_lea.vmem [#allocation10], %s411
        // Predicated region
        $region61: #{tpu_custom_call.1} parent=47 // pred_check
          %p413 = pneg %p195
        $region62: #{tpu_custom_call.1} parent=47 // pred_check_branch
          %415 = sbr.rel (%p413) target = $region64
        $region63: #{tpu_custom_call.1} parent=47 // pred_region
          %416 = dma.done %s410, 16
        $region64: #{tpu_custom_call.1} parent=47 // pred_fallthru
          _
        %p417 = pneg %p65
        %p418 = pneg %p62
        %s419 = sand.u32 %s30, 1
        %s420 = scalar_lea.sflag [#allocation8], %s419
        %s421 = sand.u32 %s78, 1
        %s422 = smul.addr %s421, 64
        %s423 = scalar_lea.vmem [#allocation7], %s422
        %p424 = pneg %p91
        %p425 = pneg %p88
        %p426 = scmp.lt.s32.totalorder %s35, 1
        %s427 = scalar_select %p426, %s35, 1
        %s428 = scalar_lea.vmem %s3, %s427
        %p429 = pneg %p117
        %p430 = pneg %p114
        %s431 = sand.u32 %s30, 1
        %s432 = scalar_lea.sflag [#allocation8], %s431
        %s433 = sand.u32 %s130, 1
        %s434 = smul.addr %s433, 64
        %s435 = scalar_lea.vmem [#allocation9], %s434
        %p436 = pneg %p143
        %p437 = pneg %p140
        %p438 = scmp.lt.s32.totalorder %s35, 1
        %s439 = scalar_select %p438, %s35, 1
        %s440 = scalar_lea.vmem %s5, %s439
        %p441 = pneg %p169
        %p442 = pneg %p166
        %s443 = sand.u32 %s182, 1
        %s444 = scalar_lea.sflag [#allocation11], %s443
        %s445 = sand.u32 %s182, 1
        %s446 = scalar_lea.vmem [#allocation10], %s445
        %p447 = pneg %p195
        %p448 = pneg %p192
        %s449 = smul.u32 2, %s36
        %p450 = scmp.lt.s32.totalorder %s449, 1
        %s451 = scalar_select %p450, %s449, 1
        %s452 = smul.addr %s451, 4
        %s453 = scalar_lea.vmem %s7, %s452
        %p454 = pneg %p221
        %p455 = pneg %p218
        %p456 = pneg %p247
        %p457 = pneg %p244
        %p458 = pneg %p268
        %p459 = pneg %p265
        %p460 = scmp.lt.s32.totalorder %s35, 1
        %s461 = scalar_select %p460, %s35, 1
        %s462 = scalar_lea.vmem %s3, %s461
        %p463 = scmp.lt.s32.totalorder %s35, 1
        %s464 = scalar_select %p463, %s35, 1
        %s465 = scalar_lea.vmem %s5, %s464
        %s466 = smul.u32 2, %s36
        %p467 = scmp.lt.s32.totalorder %s466, 1
        %s468 = scalar_select %p467, %s466, 1
        %s469 = smul.addr %s468, 4
        %s470 = scalar_lea.vmem %s7, %s469
        %s471 = smul.u32 2, %s36
        %s472 = smul.u32 32, %s36
        %s474 = sand.u32 %s35, 1
        %s475 = ssub.s32 1, %s474
        %p476 = scmp.eq.s32.totalorder %s35, 0
        %p477 = scmp.eq.s32.totalorder %s36, 0
        %p478 = pnand %p476, %p477
        %p479 = pneg %p478
        %p480 = scmp.eq.s32.totalorder %s37, 0
        %p481 = pnand %p479, %p480
        %p482 = pneg %p481
        // Predicated region
        $region65: #{tpu_custom_call.1} parent=47 // pred_check
          _
        $region66: #{tpu_custom_call.1} parent=47 // pred_check_branch
          %484 = sbr.rel (%p481) target = $region68
        $region67: #{tpu_custom_call.1} parent=47 // pred_region
          $region69: #{tpu_custom_call.1} parent=67
            #allocation15 [shape = 's32[1]{0}', space=sflag, size = 0x4, scoped, tag = 'scoped memory for tpu_custom_call.1']
            // Predicated region
            $region70: #{tpu_custom_call.1} parent=69 // pred_check
              _
            $region71: #{tpu_custom_call.1} parent=69 // pred_check_branch
              %486 = sbr.rel target = $region73
            $region72: #{tpu_custom_call.1} parent=69 // pred_region
              %487 = sst [smem:[#allocation18]] [#allocation17]
              %488 = sst [smem:[#allocation19]] [#allocation16]
            $region73: #{tpu_custom_call.1} parent=69 // pred_fallthru
              _
            %490 = shalt.err (0)
            %s492 = sshll.u32 [#allocation3], 4
            %s493 = int_to_ptr.vmem [resolvable:$true] %s492
            %495 = dma.hbm_to_vmem [thread:$0]  %s1, 2048, %s493, [#allocation15]
            %s496 = smul.u32 4, 32
            %s497 = smul.u32 %s496, 1
            %s498 = sshll.u32 %s497, 4
            %499 = dma.done [#allocation15], %s498
          %500 = vst [vmem:[#allocation13] sm:$0xff] 0.0
        $region68: #{tpu_custom_call.1} parent=47 // pred_fallthru
          _
        // Predicated region
        $region74: #{tpu_custom_call.1} parent=47 // pred_check
          %p501 = pneg %p480
        $region75: #{tpu_custom_call.1} parent=47 // pred_check_branch
          %503 = sbr.rel (%p501) target = $region77
        $region76: #{tpu_custom_call.1} parent=47 // pred_region
          %504 = vst [vmem:[#allocation2] sm:$0xff] 0.0
          %505 = vst [vmem:[#allocation2 + $0x8] sm:$0xff] 0.0
          %506 = vst [vmem:[#allocation2 + $0x10] sm:$0xff] 0.0
          %507 = vst [vmem:[#allocation2 + $0x18] sm:$0xff] 0.0
          %508 = vst [vmem:[#allocation2 + $0x20] sm:$0xff] 0.0
          %509 = vst [vmem:[#allocation2 + $0x28] sm:$0xff] 0.0
          %510 = vst [vmem:[#allocation2 + $0x30] sm:$0xff] 0.0
          %511 = vst [vmem:[#allocation2 + $0x38] sm:$0xff] 0.0
          %512 = vst [vmem:[#allocation2 + $0x40] sm:$0xff] 0.0
          %513 = vst [vmem:[#allocation2 + $0x48] sm:$0xff] 0.0
          %514 = vst [vmem:[#allocation2 + $0x50] sm:$0xff] 0.0
          %515 = vst [vmem:[#allocation2 + $0x58] sm:$0xff] 0.0
          %516 = vst [vmem:[#allocation2 + $0x60] sm:$0xff] 0.0
          %517 = vst [vmem:[#allocation2 + $0x68] sm:$0xff] 0.0
          %518 = vst [vmem:[#allocation2 + $0x70] sm:$0xff] 0.0
          %519 = vst [vmem:[#allocation2 + $0x78] sm:$0xff] 0.0
          %520 = vst [vmem:[#allocation2 + $0x80] sm:$0xff] 0.0
          %521 = vst [vmem:[#allocation2 + $0x88] sm:$0xff] 0.0
          %522 = vst [vmem:[#allocation2 + $0x90] sm:$0xff] 0.0
          %523 = vst [vmem:[#allocation2 + $0x98] sm:$0xff] 0.0
          %524 = vst [vmem:[#allocation2 + $0xa0] sm:$0xff] 0.0
          %525 = vst [vmem:[#allocation2 + $0xa8] sm:$0xff] 0.0
          %526 = vst [vmem:[#allocation2 + $0xb0] sm:$0xff] 0.0
          %527 = vst [vmem:[#allocation2 + $0xb8] sm:$0xff] 0.0
          %528 = vst [vmem:[#allocation2 + $0xc0] sm:$0xff] 0.0
          %529 = vst [vmem:[#allocation2 + $0xc8] sm:$0xff] 0.0
          %530 = vst [vmem:[#allocation2 + $0xd0] sm:$0xff] 0.0
          %531 = vst [vmem:[#allocation2 + $0xd8] sm:$0xff] 0.0
          %532 = vst [vmem:[#allocation2 + $0xe0] sm:$0xff] 0.0
          %533 = vst [vmem:[#allocation2 + $0xe8] sm:$0xff] 0.0
          %534 = vst [vmem:[#allocation2 + $0xf0] sm:$0xff] 0.0
          %535 = vst [vmem:[#allocation2 + $0xf8] sm:$0xff] 0.0
        $region77: #{tpu_custom_call.1} parent=47 // pred_fallthru
          _
        %s536 = smul.u32 %s37, 256
        %s537 = smul.u32 %s36, 256
        %s538 = sshra.s32 %s537, 3
        %s539 = sand.u32 %s537, 7
        %s540 = smul.u32 %s538, 2
        %s541 = smul.addr %s540, 4
        %s542 = scalar_lea.vmem [#allocation4], %s541
        %v543 = vld [vmem:[%s542] sm:$0xff]
        %v544 = vld [vmem:[%s542 + $0x8] sm:$0xff]
        %v545 = vld [vmem:[%s542 + $0x10] sm:$0xff]
        %v546 = vld [vmem:[%s542 + $0x18] sm:$0xff]
        %v547 = vld [vmem:[%s542 + $0x20] sm:$0xff]
        %v548 = vld [vmem:[%s542 + $0x28] sm:$0xff]
        %v549 = vld [vmem:[%s542 + $0x30] sm:$0xff]
        %v550 = vld [vmem:[%s542 + $0x38] sm:$0xff]
        %v551 = vld [vmem:[%s542 + $0x40] sm:$0xff]
        %v552 = vld [vmem:[%s542 + $0x48] sm:$0xff]
        %v553 = vld [vmem:[%s542 + $0x50] sm:$0xff]
        %v554 = vld [vmem:[%s542 + $0x58] sm:$0xff]
        %v555 = vld [vmem:[%s542 + $0x60] sm:$0xff]
        %v556 = vld [vmem:[%s542 + $0x68] sm:$0xff]
        %v557 = vld [vmem:[%s542 + $0x70] sm:$0xff]
        %v558 = vld [vmem:[%s542 + $0x78] sm:$0xff]
        %v559 = vld [vmem:[%s542 + $0x80] sm:$0xff]
        %v560 = vld [vmem:[%s542 + $0x88] sm:$0xff]
        %v561 = vld [vmem:[%s542 + $0x90] sm:$0xff]
        %v562 = vld [vmem:[%s542 + $0x98] sm:$0xff]
        %v563 = vld [vmem:[%s542 + $0xa0] sm:$0xff]
        %v564 = vld [vmem:[%s542 + $0xa8] sm:$0xff]
        %v565 = vld [vmem:[%s542 + $0xb0] sm:$0xff]
        %v566 = vld [vmem:[%s542 + $0xb8] sm:$0xff]
        %v567 = vld [vmem:[%s542 + $0xc0] sm:$0xff]
        %v568 = vld [vmem:[%s542 + $0xc8] sm:$0xff]
        %v569 = vld [vmem:[%s542 + $0xd0] sm:$0xff]
        %v570 = vld [vmem:[%s542 + $0xd8] sm:$0xff]
        %v571 = vld [vmem:[%s542 + $0xe0] sm:$0xff]
        %v572 = vld [vmem:[%s542 + $0xe8] sm:$0xff]
        %v573 = vld [vmem:[%s542 + $0xf0] sm:$0xff]
        %v574 = vld [vmem:[%s542 + $0xf8] sm:$0xff]
        %s575 = sshra.s32 %s536, 3
        %s576 = sand.u32 %s536, 7
        %s577 = smul.u32 %s474, 32
        %s578 = sadd.s32 %s575, %s577
        %s579 = smul.addr %s578, 4
        %s580 = scalar_lea.vmem [#allocation3], %s579
        %v581 = vld [vmem:[%s580] sm:$0xf]
        %v582 = vld [vmem:[%s580 + $0x4] sm:$0xf]
        %v583 = vld [vmem:[%s580 + $0x8] sm:$0xf]
        %v584 = vld [vmem:[%s580 + $0xc] sm:$0xf]
        %v585 = vld [vmem:[%s580 + $0x10] sm:$0xf]
        %v586 = vld [vmem:[%s580 + $0x14] sm:$0xf]
        %v587 = vld [vmem:[%s580 + $0x18] sm:$0xf]
        %v588 = vld [vmem:[%s580 + $0x1c] sm:$0xf]
        %v589 = vld [vmem:[%s580 + $0x20] sm:$0xf]
        %v590 = vld [vmem:[%s580 + $0x24] sm:$0xf]
        %v591 = vld [vmem:[%s580 + $0x28] sm:$0xf]
        %v592 = vld [vmem:[%s580 + $0x2c] sm:$0xf]
        %v593 = vld [vmem:[%s580 + $0x30] sm:$0xf]
        %v594 = vld [vmem:[%s580 + $0x34] sm:$0xf]
        %v595 = vld [vmem:[%s580 + $0x38] sm:$0xf]
        %v596 = vld [vmem:[%s580 + $0x3c] sm:$0xf]
        %v597 = vld [vmem:[%s580 + $0x40] sm:$0xf]
        %v598 = vld [vmem:[%s580 + $0x44] sm:$0xf]
        %v599 = vld [vmem:[%s580 + $0x48] sm:$0xf]
        %v600 = vld [vmem:[%s580 + $0x4c] sm:$0xf]
        %v601 = vld [vmem:[%s580 + $0x50] sm:$0xf]
        %v602 = vld [vmem:[%s580 + $0x54] sm:$0xf]
        %v603 = vld [vmem:[%s580 + $0x58] sm:$0xf]
        %v604 = vld [vmem:[%s580 + $0x5c] sm:$0xf]
        %v605 = vld [vmem:[%s580 + $0x60] sm:$0xf]
        %v606 = vld [vmem:[%s580 + $0x64] sm:$0xf]
        %v607 = vld [vmem:[%s580 + $0x68] sm:$0xf]
        %v608 = vld [vmem:[%s580 + $0x6c] sm:$0xf]
        %v609 = vld [vmem:[%s580 + $0x70] sm:$0xf]
        %v610 = vld [vmem:[%s580 + $0x74] sm:$0xf]
        %v611 = vld [vmem:[%s580 + $0x78] sm:$0xf]
        %v612 = vld [vmem:[%s580 + $0x7c] sm:$0xf]
        %v613 = vld [vmem:[#allocation2] sm:$0xff]
        %v614 = vld [vmem:[#allocation2 + $0x8] sm:$0xff]
        %v615 = vld [vmem:[#allocation2 + $0x10] sm:$0xff]
        %v616 = vld [vmem:[#allocation2 + $0x18] sm:$0xff]
        %v617 = vld [vmem:[#allocation2 + $0x20] sm:$0xff]
        %v618 = vld [vmem:[#allocation2 + $0x28] sm:$0xff]
        %v619 = vld [vmem:[#allocation2 + $0x30] sm:$0xff]
        %v620 = vld [vmem:[#allocation2 + $0x38] sm:$0xff]
        %v621 = vld [vmem:[#allocation2 + $0x40] sm:$0xff]
        %v622 = vld [vmem:[#allocation2 + $0x48] sm:$0xff]
        %v623 = vld [vmem:[#allocation2 + $0x50] sm:$0xff]
        %v624 = vld [vmem:[#allocation2 + $0x58] sm:$0xff]
        %v625 = vld [vmem:[#allocation2 + $0x60] sm:$0xff]
        %v626 = vld [vmem:[#allocation2 + $0x68] sm:$0xff]
        %v627 = vld [vmem:[#allocation2 + $0x70] sm:$0xff]
        %v628 = vld [vmem:[#allocation2 + $0x78] sm:$0xff]
        %v629 = vld [vmem:[#allocation2 + $0x80] sm:$0xff]
        %v630 = vld [vmem:[#allocation2 + $0x88] sm:$0xff]
        %v631 = vld [vmem:[#allocation2 + $0x90] sm:$0xff]
        %v632 = vld [vmem:[#allocation2 + $0x98] sm:$0xff]
        %v633 = vld [vmem:[#allocation2 + $0xa0] sm:$0xff]
        %v634 = vld [vmem:[#allocation2 + $0xa8] sm:$0xff]
        %v635 = vld [vmem:[#allocation2 + $0xb0] sm:$0xff]
        %v636 = vld [vmem:[#allocation2 + $0xb8] sm:$0xff]
        %v637 = vld [vmem:[#allocation2 + $0xc0] sm:$0xff]
        %v638 = vld [vmem:[#allocation2 + $0xc8] sm:$0xff]
        %v639 = vld [vmem:[#allocation2 + $0xd0] sm:$0xff]
        %v640 = vld [vmem:[#allocation2 + $0xd8] sm:$0xff]
        %v641 = vld [vmem:[#allocation2 + $0xe0] sm:$0xff]
        %v642 = vld [vmem:[#allocation2 + $0xe8] sm:$0xff]
        %v643 = vld [vmem:[#allocation2 + $0xf0] sm:$0xff]
        %v644 = vld [vmem:[#allocation2 + $0xf8] sm:$0xff]
        %v677 = vunpack.c.l.b16 %v543
        %v678 = vunpack.c.h.b16 %v543
        %v679 = vunpack.c.l.b16 %v544
        %v680 = vunpack.c.h.b16 %v544
        %v681 = vunpack.c.l.b16 %v545
        %v682 = vunpack.c.h.b16 %v545
        %v683 = vunpack.c.l.b16 %v546
        %v684 = vunpack.c.h.b16 %v546
        %v685 = vunpack.c.l.b16 %v547
        %v686 = vunpack.c.h.b16 %v547
        %v687 = vunpack.c.l.b16 %v548
        %v688 = vunpack.c.h.b16 %v548
        %v689 = vunpack.c.l.b16 %v549
        %v690 = vunpack.c.h.b16 %v549
        %v691 = vunpack.c.l.b16 %v550
        %v692 = vunpack.c.h.b16 %v550
        %v693 = vunpack.c.l.b16 %v551
        %v694 = vunpack.c.h.b16 %v551
        %v695 = vunpack.c.l.b16 %v552
        %v696 = vunpack.c.h.b16 %v552
        %v697 = vunpack.c.l.b16 %v553
        %v698 = vunpack.c.h.b16 %v553
        %v699 = vunpack.c.l.b16 %v554
        %v700 = vunpack.c.h.b16 %v554
        %v701 = vunpack.c.l.b16 %v555
        %v702 = vunpack.c.h.b16 %v555
        %v703 = vunpack.c.l.b16 %v556
        %v704 = vunpack.c.h.b16 %v556
        %v705 = vunpack.c.l.b16 %v557
        %v706 = vunpack.c.h.b16 %v557
        %v707 = vunpack.c.l.b16 %v558
        %v708 = vunpack.c.h.b16 %v558
        %v709 = vunpack.c.l.b16 %v559
        %v710 = vunpack.c.h.b16 %v559
        %v711 = vunpack.c.l.b16 %v560
        %v712 = vunpack.c.h.b16 %v560
        %v713 = vunpack.c.l.b16 %v561
        %v714 = vunpack.c.h.b16 %v561
        %v715 = vunpack.c.l.b16 %v562
        %v716 = vunpack.c.h.b16 %v562
        %v717 = vunpack.c.l.b16 %v563
        %v718 = vunpack.c.h.b16 %v563
        %v719 = vunpack.c.l.b16 %v564
        %v720 = vunpack.c.h.b16 %v564
        %v721 = vunpack.c.l.b16 %v565
        %v722 = vunpack.c.h.b16 %v565
        %v723 = vunpack.c.l.b16 %v566
        %v724 = vunpack.c.h.b16 %v566
        %v725 = vunpack.c.l.b16 %v567
        %v726 = vunpack.c.h.b16 %v567
        %v727 = vunpack.c.l.b16 %v568
        %v728 = vunpack.c.h.b16 %v568
        %v729 = vunpack.c.l.b16 %v569
        %v730 = vunpack.c.h.b16 %v569
        %v731 = vunpack.c.l.b16 %v570
        %v732 = vunpack.c.h.b16 %v570
        %v733 = vunpack.c.l.b16 %v571
        %v734 = vunpack.c.h.b16 %v571
        %v735 = vunpack.c.l.b16 %v572
        %v736 = vunpack.c.h.b16 %v572
        %v737 = vunpack.c.l.b16 %v573
        %v738 = vunpack.c.h.b16 %v573
        %v739 = vunpack.c.l.b16 %v574
        %v740 = vunpack.c.h.b16 %v574
        %v741 = vpack.c.b16 %v679, %v677
        %v742 = vpack.c.b16 %v680, %v678
        %v743 = vpack.c.b16 %v683, %v681
        %v744 = vpack.c.b16 %v684, %v682
        %v745 = vpack.c.b16 %v687, %v685
        %v746 = vpack.c.b16 %v688, %v686
        %v747 = vpack.c.b16 %v691, %v689
        %v748 = vpack.c.b16 %v692, %v690
        %v749 = vpack.c.b16 %v695, %v693
        %v750 = vpack.c.b16 %v696, %v694
        %v751 = vpack.c.b16 %v699, %v697
        %v752 = vpack.c.b16 %v700, %v698
        %v753 = vpack.c.b16 %v703, %v701
        %v754 = vpack.c.b16 %v704, %v702
        %v755 = vpack.c.b16 %v707, %v705
        %v756 = vpack.c.b16 %v708, %v706
        %v757 = vpack.c.b16 %v711, %v709
        %v758 = vpack.c.b16 %v712, %v710
        %v759 = vpack.c.b16 %v715, %v713
        %v760 = vpack.c.b16 %v716, %v714
        %v761 = vpack.c.b16 %v719, %v717
        %v762 = vpack.c.b16 %v720, %v718
        %v763 = vpack.c.b16 %v723, %v721
        %v764 = vpack.c.b16 %v724, %v722
        %v765 = vpack.c.b16 %v727, %v725
        %v766 = vpack.c.b16 %v728, %v726
        %v767 = vpack.c.b16 %v731, %v729
        %v768 = vpack.c.b16 %v732, %v730
        %v769 = vpack.c.b16 %v735, %v733
        %v770 = vpack.c.b16 %v736, %v734
        %v771 = vpack.c.b16 %v739, %v737
        %v772 = vpack.c.b16 %v740, %v738
        %v837 = vunpack.c.l.b16 %v581
        %v838 = vunpack.c.l.b16 %v582
        %v839 = vunpack.c.l.b16 %v583
        %v840 = vunpack.c.l.b16 %v584
        %v841 = vunpack.c.l.b16 %v585
        %v842 = vunpack.c.l.b16 %v586
        %v843 = vunpack.c.l.b16 %v587
        %v844 = vunpack.c.l.b16 %v588
        %v845 = vunpack.c.l.b16 %v589
        %v846 = vunpack.c.l.b16 %v590
        %v847 = vunpack.c.l.b16 %v591
        %v848 = vunpack.c.l.b16 %v592
        %v849 = vunpack.c.l.b16 %v593
        %v850 = vunpack.c.l.b16 %v594
        %v851 = vunpack.c.l.b16 %v595
        %v852 = vunpack.c.l.b16 %v596
        %v853 = vunpack.c.l.b16 %v597
        %v854 = vunpack.c.l.b16 %v598
        %v855 = vunpack.c.l.b16 %v599
        %v856 = vunpack.c.l.b16 %v600
        %v857 = vunpack.c.l.b16 %v601
        %v858 = vunpack.c.l.b16 %v602
        %v859 = vunpack.c.l.b16 %v603
        %v860 = vunpack.c.l.b16 %v604
        %v861 = vunpack.c.l.b16 %v605
        %v862 = vunpack.c.l.b16 %v606
        %v863 = vunpack.c.l.b16 %v607
        %v864 = vunpack.c.l.b16 %v608
        %v865 = vunpack.c.l.b16 %v609
        %v866 = vunpack.c.l.b16 %v610
        %v867 = vunpack.c.l.b16 %v611
        %v868 = vunpack.c.l.b16 %v612
        %v869 = vpack.c.b16 %v838, %v837
        %v870 = vpack.c.b16 %v840, %v839
        %v871 = vpack.c.b16 %v842, %v841
        %v872 = vpack.c.b16 %v844, %v843
        %v873 = vpack.c.b16 %v846, %v845
        %v874 = vpack.c.b16 %v848, %v847
        %v875 = vpack.c.b16 %v850, %v849
        %v876 = vpack.c.b16 %v852, %v851
        %v877 = vpack.c.b16 %v854, %v853
        %v878 = vpack.c.b16 %v856, %v855
        %v879 = vpack.c.b16 %v858, %v857
        %v880 = vpack.c.b16 %v860, %v859
        %v881 = vpack.c.b16 %v862, %v861
        %v882 = vpack.c.b16 %v864, %v863
        %v883 = vpack.c.b16 %v866, %v865
        %v884 = vpack.c.b16 %v868, %v867
        %901 = vmatprep.subr.bf16.mxu0 0
        %902 = vmatpush1.bf16.msra.mxu0 %v876
        %903 = vmatprep.subr.bf16.mxu0 0
        %904 = vmatpush1.bf16.msra.mxu0 %v875
        %905 = vmatprep.subr.bf16.mxu0 0
        %906 = vmatpush1.bf16.msra.mxu0 %v874
        %907 = vmatprep.subr.bf16.mxu0 0
        %908 = vmatpush1.bf16.msra.mxu0 %v873
        %909 = vmatprep.subr.bf16.mxu0 0
        %910 = vmatpush1.bf16.msra.mxu0 %v872
        %911 = vmatprep.subr.bf16.mxu0 0
        %912 = vmatpush1.bf16.msra.mxu0 %v871
        %913 = vmatprep.subr.bf16.mxu0 0
        %914 = vmatpush1.bf16.msra.mxu0 %v870
        %915 = vmatprep.subr.bf16.mxu0 0
        %916 = vmatpush1.bf16.msra.mxu0 %v869
        %917 = vmatprep.subr.bf16.mxu0 0
        %918 = vmatpush2.bf16.msra.mxu0 %v884
        %919 = vmatprep.subr.bf16.mxu0 0
        %920 = vmatpush2.bf16.msra.mxu0 %v883
        %921 = vmatprep.subr.bf16.mxu0 0
        %922 = vmatpush2.bf16.msra.mxu0 %v882
        %923 = vmatprep.subr.bf16.mxu0 0
        %924 = vmatpush2.bf16.msra.mxu0 %v881
        %925 = vmatprep.subr.bf16.mxu0 0
        %926 = vmatpush2.bf16.msra.mxu0 %v880
        %927 = vmatprep.subr.bf16.mxu0 0
        %928 = vmatpush2.bf16.msra.mxu0 %v879
        %929 = vmatprep.subr.bf16.mxu0 0
        %930 = vmatpush2.bf16.msra.mxu0 %v878
        %931 = vmatprep.subr.bf16.mxu0 0
        %932 = vmatpush2.bf16.msra.mxu0 %v877
        %933 = vmatprep.mubr.bf16.mxu0 %v742
        %934 = vmatmul.mubr.bf16.gmra.mxu0 %v741
        %v935 = vpop.f32.mrf.mxu0
        %v936 = vadd.f32 0.0, %v935
        %v937 = vpop.f32.mrf.mxu0
        %v938 = vpop.f32.mrf.mxu0
        %v939 = vadd.f32 0.0, %v938
        %v940 = vpop.f32.mrf.mxu0
        %941 = vmatprep.mubr.bf16.mxu0 %v744
        %942 = vmatmul.mubr.bf16.gmra.mxu0 %v743
        %v943 = vpop.f32.mrf.mxu0
        %v944 = vadd.f32 0.0, %v943
        %v945 = vpop.f32.mrf.mxu0
        %v946 = vpop.f32.mrf.mxu0
        %v947 = vadd.f32 0.0, %v946
        %v948 = vpop.f32.mrf.mxu0
        %949 = vmatprep.mubr.bf16.mxu0 %v746
        %950 = vmatmul.mubr.bf16.gmra.mxu0 %v745
        %v951 = vpop.f32.mrf.mxu0
        %v952 = vadd.f32 0.0, %v951
        %v953 = vpop.f32.mrf.mxu0
        %v954 = vpop.f32.mrf.mxu0
        %v955 = vadd.f32 0.0, %v954
        %v956 = vpop.f32.mrf.mxu0
        %957 = vmatprep.mubr.bf16.mxu0 %v748
        %958 = vmatmul.mubr.bf16.gmra.mxu0 %v747
        %v959 = vpop.f32.mrf.mxu0
        %v960 = vadd.f32 0.0, %v959
        %v961 = vpop.f32.mrf.mxu0
        %v962 = vpop.f32.mrf.mxu0
        %v963 = vadd.f32 0.0, %v962
        %v964 = vpop.f32.mrf.mxu0
        %965 = vmatprep.mubr.bf16.mxu0 %v750
        %966 = vmatmul.mubr.bf16.gmra.mxu0 %v749
        %v967 = vpop.f32.mrf.mxu0
        %v968 = vadd.f32 0.0, %v967
        %v969 = vpop.f32.mrf.mxu0
        %v970 = vpop.f32.mrf.mxu0
        %v971 = vadd.f32 0.0, %v970
        %v972 = vpop.f32.mrf.mxu0
        %973 = vmatprep.mubr.bf16.mxu0 %v752
        %974 = vmatmul.mubr.bf16.gmra.mxu0 %v751
        %v975 = vpop.f32.mrf.mxu0
        %v976 = vadd.f32 0.0, %v975
        %v977 = vpop.f32.mrf.mxu0
        %v978 = vpop.f32.mrf.mxu0
        %v979 = vadd.f32 0.0, %v978
        %v980 = vpop.f32.mrf.mxu0
        %981 = vmatprep.mubr.bf16.mxu0 %v754
        %982 = vmatmul.mubr.bf16.gmra.mxu0 %v753
        %v983 = vpop.f32.mrf.mxu0
        %v984 = vadd.f32 0.0, %v983
        %v985 = vpop.f32.mrf.mxu0
        %v986 = vpop.f32.mrf.mxu0
        %v987 = vadd.f32 0.0, %v986
        %v988 = vpop.f32.mrf.mxu0
        %989 = vmatprep.mubr.bf16.mxu0 %v756
        %990 = vmatmul.mubr.bf16.gmra.mxu0 %v755
        %v991 = vpop.f32.mrf.mxu0
        %v992 = vadd.f32 0.0, %v991
        %v993 = vpop.f32.mrf.mxu0
        %v994 = vpop.f32.mrf.mxu0
        %v995 = vadd.f32 0.0, %v994
        %v996 = vpop.f32.mrf.mxu0
        %997 = vmatprep.mubr.bf16.mxu0 %v758
        %998 = vmatmul.mubr.bf16.gmra.mxu0 %v757
        %v999 = vpop.f32.mrf.mxu0
        %v1000 = vadd.f32 0.0, %v999
        %v1001 = vpop.f32.mrf.mxu0
        %v1002 = vpop.f32.mrf.mxu0
        %v1003 = vadd.f32 0.0, %v1002
        %v1004 = vpop.f32.mrf.mxu0
        %1005 = vmatprep.mubr.bf16.mxu0 %v760
        %1006 = vmatmul.mubr.bf16.gmra.mxu0 %v759
        %v1007 = vpop.f32.mrf.mxu0
        %v1008 = vadd.f32 0.0, %v1007
        %v1009 = vpop.f32.mrf.mxu0
        %v1010 = vpop.f32.mrf.mxu0
        %v1011 = vadd.f32 0.0, %v1010
        %v1012 = vpop.f32.mrf.mxu0
        %1013 = vmatprep.mubr.bf16.mxu0 %v762
        %1014 = vmatmul.mubr.bf16.gmra.mxu0 %v761
        %v1015 = vpop.f32.mrf.mxu0
        %v1016 = vadd.f32 0.0, %v1015
        %v1017 = vpop.f32.mrf.mxu0
        %v1018 = vpop.f32.mrf.mxu0
        %v1019 = vadd.f32 0.0, %v1018
        %v1020 = vpop.f32.mrf.mxu0
        %1021 = vmatprep.mubr.bf16.mxu0 %v764
        %1022 = vmatmul.mubr.bf16.gmra.mxu0 %v763
        %v1023 = vpop.f32.mrf.mxu0
        %v1024 = vadd.f32 0.0, %v1023
        %v1025 = vpop.f32.mrf.mxu0
        %v1026 = vpop.f32.mrf.mxu0
        %v1027 = vadd.f32 0.0, %v1026
        %v1028 = vpop.f32.mrf.mxu0
        %1029 = vmatprep.mubr.bf16.mxu0 %v766
        %1030 = vmatmul.mubr.bf16.gmra.mxu0 %v765
        %v1031 = vpop.f32.mrf.mxu0
        %v1032 = vadd.f32 0.0, %v1031
        %v1033 = vpop.f32.mrf.mxu0
        %v1034 = vpop.f32.mrf.mxu0
        %v1035 = vadd.f32 0.0, %v1034
        %v1036 = vpop.f32.mrf.mxu0
        %1037 = vmatprep.mubr.bf16.mxu0 %v768
        %1038 = vmatmul.mubr.bf16.gmra.mxu0 %v767
        %v1039 = vpop.f32.mrf.mxu0
        %v1040 = vadd.f32 0.0, %v1039
        %v1041 = vpop.f32.mrf.mxu0
        %v1042 = vpop.f32.mrf.mxu0
        %v1043 = vadd.f32 0.0, %v1042
        %v1044 = vpop.f32.mrf.mxu0
        %1045 = vmatprep.mubr.bf16.mxu0 %v770
        %1046 = vmatmul.mubr.bf16.gmra.mxu0 %v769
        %v1047 = vpop.f32.mrf.mxu0
        %v1048 = vadd.f32 0.0, %v1047
        %v1049 = vpop.f32.mrf.mxu0
        %v1050 = vpop.f32.mrf.mxu0
        %v1051 = vadd.f32 0.0, %v1050
        %v1052 = vpop.f32.mrf.mxu0
        %1053 = vmatprep.mubr.bf16.mxu0 %v772
        %1054 = vmatmul.mubr.bf16.gmra.mxu0 %v771
        %v1055 = vpop.f32.mrf.mxu0
        %v1056 = vadd.f32 0.0, %v1055
        %v1057 = vpop.f32.mrf.mxu0
        %v1058 = vpop.f32.mrf.mxu0
        %v1059 = vadd.f32 0.0, %v1058
        %v1060 = vpop.f32.mrf.mxu0
        %1061 = vdwg.mxu0
        %v1062 = vadd.f32 %v613, %v936
        %v1063 = vadd.f32 %v614, %v939
        %v1064 = vadd.f32 %v615, %v944
        %v1065 = vadd.f32 %v616, %v947
        %v1066 = vadd.f32 %v617, %v952
        %v1067 = vadd.f32 %v618, %v955
        %v1068 = vadd.f32 %v619, %v960
        %v1069 = vadd.f32 %v620, %v963
        %v1070 = vadd.f32 %v621, %v968
        %v1071 = vadd.f32 %v622, %v971
        %v1072 = vadd.f32 %v623, %v976
        %v1073 = vadd.f32 %v624, %v979
        %v1074 = vadd.f32 %v625, %v984
        %v1075 = vadd.f32 %v626, %v987
        %v1076 = vadd.f32 %v627, %v992
        %v1077 = vadd.f32 %v628, %v995
        %v1078 = vadd.f32 %v629, %v1000
        %v1079 = vadd.f32 %v630, %v1003
        %v1080 = vadd.f32 %v631, %v1008
        %v1081 = vadd.f32 %v632, %v1011
        %v1082 = vadd.f32 %v633, %v1016
        %v1083 = vadd.f32 %v634, %v1019
        %v1084 = vadd.f32 %v635, %v1024
        %v1085 = vadd.f32 %v636, %v1027
        %v1086 = vadd.f32 %v637, %v1032
        %v1087 = vadd.f32 %v638, %v1035
        %v1088 = vadd.f32 %v639, %v1040
        %v1089 = vadd.f32 %v640, %v1043
        %v1090 = vadd.f32 %v641, %v1048
        %v1091 = vadd.f32 %v642, %v1051
        %v1092 = vadd.f32 %v643, %v1056
        %v1093 = vadd.f32 %v644, %v1059
        %1094 = vst [vmem:[#allocation2] sm:$0xff] %v1062
        %1095 = vst [vmem:[#allocation2 + $0x8] sm:$0xff] %v1063
        %1096 = vst [vmem:[#allocation2 + $0x10] sm:$0xff] %v1064
        %1097 = vst [vmem:[#allocation2 + $0x18] sm:$0xff] %v1065
        %1098 = vst [vmem:[#allocation2 + $0x20] sm:$0xff] %v1066
        %1099 = vst [vmem:[#allocation2 + $0x28] sm:$0xff] %v1067
        %1100 = vst [vmem:[#allocation2 + $0x30] sm:$0xff] %v1068
        %1101 = vst [vmem:[#allocation2 + $0x38] sm:$0xff] %v1069
        %1102 = vst [vmem:[#allocation2 + $0x40] sm:$0xff] %v1070
        %1103 = vst [vmem:[#allocation2 + $0x48] sm:$0xff] %v1071
        %1104 = vst [vmem:[#allocation2 + $0x50] sm:$0xff] %v1072
        %1105 = vst [vmem:[#allocation2 + $0x58] sm:$0xff] %v1073
        %1106 = vst [vmem:[#allocation2 + $0x60] sm:$0xff] %v1074
        %1107 = vst [vmem:[#allocation2 + $0x68] sm:$0xff] %v1075
        %1108 = vst [vmem:[#allocation2 + $0x70] sm:$0xff] %v1076
        %1109 = vst [vmem:[#allocation2 + $0x78] sm:$0xff] %v1077
        %1110 = vst [vmem:[#allocation2 + $0x80] sm:$0xff] %v1078
        %1111 = vst [vmem:[#allocation2 + $0x88] sm:$0xff] %v1079
        %1112 = vst [vmem:[#allocation2 + $0x90] sm:$0xff] %v1080
        %1113 = vst [vmem:[#allocation2 + $0x98] sm:$0xff] %v1081
        %1114 = vst [vmem:[#allocation2 + $0xa0] sm:$0xff] %v1082
        %1115 = vst [vmem:[#allocation2 + $0xa8] sm:$0xff] %v1083
        %1116 = vst [vmem:[#allocation2 + $0xb0] sm:$0xff] %v1084
        %1117 = vst [vmem:[#allocation2 + $0xb8] sm:$0xff] %v1085
        %1118 = vst [vmem:[#allocation2 + $0xc0] sm:$0xff] %v1086
        %1119 = vst [vmem:[#allocation2 + $0xc8] sm:$0xff] %v1087
        %1120 = vst [vmem:[#allocation2 + $0xd0] sm:$0xff] %v1088
        %1121 = vst [vmem:[#allocation2 + $0xd8] sm:$0xff] %v1089
        %1122 = vst [vmem:[#allocation2 + $0xe0] sm:$0xff] %v1090
        %1123 = vst [vmem:[#allocation2 + $0xe8] sm:$0xff] %v1091
        %1124 = vst [vmem:[#allocation2 + $0xf0] sm:$0xff] %v1092
        %1125 = vst [vmem:[#allocation2 + $0xf8] sm:$0xff] %v1093
        // Predicated region
        $region78: #{tpu_custom_call.1} parent=47 // pred_check
          %p1126 = pneg %p480
        $region79: #{tpu_custom_call.1} parent=47 // pred_check_branch
          %1128 = sbr.rel (%p1126) target = $region81
        $region80: #{tpu_custom_call.1} parent=47 // pred_region
          %s1129 = sadd.s32 %s538, %s577
          %s1130 = smul.addr %s1129, 4
          %s1131 = scalar_lea.vmem [#allocation3], %s1130
          %v1132 = vld [vmem:[%s1131] sm:$0xf]
          %v1133 = vld [vmem:[%s1131 + $0x4] sm:$0xf]
          %v1134 = vld [vmem:[%s1131 + $0x8] sm:$0xf]
          %v1135 = vld [vmem:[%s1131 + $0xc] sm:$0xf]
          %v1136 = vld [vmem:[%s1131 + $0x10] sm:$0xf]
          %v1137 = vld [vmem:[%s1131 + $0x14] sm:$0xf]
          %v1138 = vld [vmem:[%s1131 + $0x18] sm:$0xf]
          %v1139 = vld [vmem:[%s1131 + $0x1c] sm:$0xf]
          %v1140 = vld [vmem:[%s1131 + $0x20] sm:$0xf]
          %v1141 = vld [vmem:[%s1131 + $0x24] sm:$0xf]
          %v1142 = vld [vmem:[%s1131 + $0x28] sm:$0xf]
          %v1143 = vld [vmem:[%s1131 + $0x2c] sm:$0xf]
          %v1144 = vld [vmem:[%s1131 + $0x30] sm:$0xf]
          %v1145 = vld [vmem:[%s1131 + $0x34] sm:$0xf]
          %v1146 = vld [vmem:[%s1131 + $0x38] sm:$0xf]
          %v1147 = vld [vmem:[%s1131 + $0x3c] sm:$0xf]
          %v1148 = vld [vmem:[%s1131 + $0x40] sm:$0xf]
          %v1149 = vld [vmem:[%s1131 + $0x44] sm:$0xf]
          %v1150 = vld [vmem:[%s1131 + $0x48] sm:$0xf]
          %v1151 = vld [vmem:[%s1131 + $0x4c] sm:$0xf]
          %v1152 = vld [vmem:[%s1131 + $0x50] sm:$0xf]
          %v1153 = vld [vmem:[%s1131 + $0x54] sm:$0xf]
          %v1154 = vld [vmem:[%s1131 + $0x58] sm:$0xf]
          %v1155 = vld [vmem:[%s1131 + $0x5c] sm:$0xf]
          %v1156 = vld [vmem:[%s1131 + $0x60] sm:$0xf]
          %v1157 = vld [vmem:[%s1131 + $0x64] sm:$0xf]
          %v1158 = vld [vmem:[%s1131 + $0x68] sm:$0xf]
          %v1159 = vld [vmem:[%s1131 + $0x6c] sm:$0xf]
          %v1160 = vld [vmem:[%s1131 + $0x70] sm:$0xf]
          %v1161 = vld [vmem:[%s1131 + $0x74] sm:$0xf]
          %v1162 = vld [vmem:[%s1131 + $0x78] sm:$0xf]
          %v1163 = vld [vmem:[%s1131 + $0x7c] sm:$0xf]
          %v1164 = vunpack.c.l.bf16 %v1132
          %v1165 = vunpack.c.l.bf16 %v1133
          %v1166 = vunpack.c.l.bf16 %v1134
          %v1167 = vunpack.c.l.bf16 %v1135
          %v1168 = vunpack.c.l.bf16 %v1136
          %v1169 = vunpack.c.l.bf16 %v1137
          %v1170 = vunpack.c.l.bf16 %v1138
          %v1171 = vunpack.c.l.bf16 %v1139
          %v1172 = vunpack.c.l.bf16 %v1140
          %v1173 = vunpack.c.l.bf16 %v1141
          %v1174 = vunpack.c.l.bf16 %v1142
          %v1175 = vunpack.c.l.bf16 %v1143
          %v1176 = vunpack.c.l.bf16 %v1144
          %v1177 = vunpack.c.l.bf16 %v1145
          %v1178 = vunpack.c.l.bf16 %v1146
          %v1179 = vunpack.c.l.bf16 %v1147
          %v1180 = vunpack.c.l.bf16 %v1148
          %v1181 = vunpack.c.l.bf16 %v1149
          %v1182 = vunpack.c.l.bf16 %v1150
          %v1183 = vunpack.c.l.bf16 %v1151
          %v1184 = vunpack.c.l.bf16 %v1152
          %v1185 = vunpack.c.l.bf16 %v1153
          %v1186 = vunpack.c.l.bf16 %v1154
          %v1187 = vunpack.c.l.bf16 %v1155
          %v1188 = vunpack.c.l.bf16 %v1156
          %v1189 = vunpack.c.l.bf16 %v1157
          %v1190 = vunpack.c.l.bf16 %v1158
          %v1191 = vunpack.c.l.bf16 %v1159
          %v1192 = vunpack.c.l.bf16 %v1160
          %v1193 = vunpack.c.l.bf16 %v1161
          %v1194 = vunpack.c.l.bf16 %v1162
          %v1195 = vunpack.c.l.bf16 %v1163
          %v1196 = vld [vmem:[%s412] sm:$0x1]
          %v1198 = vlaneseq
          %v1199 = vshrl.u32 %v1198, 7
          %v1200 = vsub.s32 0, %v1199
          %v1201 = vrot.slane %v1196, %v1200
          %v1203 = vmul.f32 %v1201, %v1164
          %v1204 = vmul.f32 %v1201, %v1165
          %v1205 = vmul.f32 %v1201, %v1166
          %v1206 = vmul.f32 %v1201, %v1167
          %v1207 = vmul.f32 %v1201, %v1168
          %v1208 = vmul.f32 %v1201, %v1169
          %v1209 = vmul.f32 %v1201, %v1170
          %v1210 = vmul.f32 %v1201, %v1171
          %v1211 = vmul.f32 %v1201, %v1172
          %v1212 = vmul.f32 %v1201, %v1173
          %v1213 = vmul.f32 %v1201, %v1174
          %v1214 = vmul.f32 %v1201, %v1175
          %v1215 = vmul.f32 %v1201, %v1176
          %v1216 = vmul.f32 %v1201, %v1177
          %v1217 = vmul.f32 %v1201, %v1178
          %v1218 = vmul.f32 %v1201, %v1179
          %v1219 = vmul.f32 %v1201, %v1180
          %v1220 = vmul.f32 %v1201, %v1181
          %v1221 = vmul.f32 %v1201, %v1182
          %v1222 = vmul.f32 %v1201, %v1183
          %v1223 = vmul.f32 %v1201, %v1184
          %v1224 = vmul.f32 %v1201, %v1185
          %v1225 = vmul.f32 %v1201, %v1186
          %v1226 = vmul.f32 %v1201, %v1187
          %v1227 = vmul.f32 %v1201, %v1188
          %v1228 = vmul.f32 %v1201, %v1189
          %v1229 = vmul.f32 %v1201, %v1190
          %v1230 = vmul.f32 %v1201, %v1191
          %v1231 = vmul.f32 %v1201, %v1192
          %v1232 = vmul.f32 %v1201, %v1193
          %v1233 = vmul.f32 %v1201, %v1194
          %v1234 = vmul.f32 %v1201, %v1195
          %v1235 = vld [vmem:[#allocation2] sm:$0xff]
          %v1236 = vld [vmem:[#allocation2 + $0x8] sm:$0xff]
          %v1237 = vld [vmem:[#allocation2 + $0x10] sm:$0xff]
          %v1238 = vld [vmem:[#allocation2 + $0x18] sm:$0xff]
          %v1239 = vld [vmem:[#allocation2 + $0x20] sm:$0xff]
          %v1240 = vld [vmem:[#allocation2 + $0x28] sm:$0xff]
          %v1241 = vld [vmem:[#allocation2 + $0x30] sm:$0xff]
          %v1242 = vld [vmem:[#allocation2 + $0x38] sm:$0xff]
          %v1243 = vld [vmem:[#allocation2 + $0x40] sm:$0xff]
          %v1244 = vld [vmem:[#allocation2 + $0x48] sm:$0xff]
          %v1245 = vld [vmem:[#allocation2 + $0x50] sm:$0xff]
          %v1246 = vld [vmem:[#allocation2 + $0x58] sm:$0xff]
          %v1247 = vld [vmem:[#allocation2 + $0x60] sm:$0xff]
          %v1248 = vld [vmem:[#allocation2 + $0x68] sm:$0xff]
          %v1249 = vld [vmem:[#allocation2 + $0x70] sm:$0xff]
          %v1250 = vld [vmem:[#allocation2 + $0x78] sm:$0xff]
          %v1251 = vld [vmem:[#allocation2 + $0x80] sm:$0xff]
          %v1252 = vld [vmem:[#allocation2 + $0x88] sm:$0xff]
          %v1253 = vld [vmem:[#allocation2 + $0x90] sm:$0xff]
          %v1254 = vld [vmem:[#allocation2 + $0x98] sm:$0xff]
          %v1255 = vld [vmem:[#allocation2 + $0xa0] sm:$0xff]
          %v1256 = vld [vmem:[#allocation2 + $0xa8] sm:$0xff]
          %v1257 = vld [vmem:[#allocation2 + $0xb0] sm:$0xff]
          %v1258 = vld [vmem:[#allocation2 + $0xb8] sm:$0xff]
          %v1259 = vld [vmem:[#allocation2 + $0xc0] sm:$0xff]
          %v1260 = vld [vmem:[#allocation2 + $0xc8] sm:$0xff]
          %v1261 = vld [vmem:[#allocation2 + $0xd0] sm:$0xff]
          %v1262 = vld [vmem:[#allocation2 + $0xd8] sm:$0xff]
          %v1263 = vld [vmem:[#allocation2 + $0xe0] sm:$0xff]
          %v1264 = vld [vmem:[#allocation2 + $0xe8] sm:$0xff]
          %v1265 = vld [vmem:[#allocation2 + $0xf0] sm:$0xff]
          %v1266 = vld [vmem:[#allocation2 + $0xf8] sm:$0xff]
          %v1267 = vadd.f32 %v1203, %v1235
          %v1268 = vadd.f32 %v1204, %v1236
          %v1269 = vadd.f32 %v1205, %v1237
          %v1270 = vadd.f32 %v1206, %v1238
          %v1271 = vadd.f32 %v1207, %v1239
          %v1272 = vadd.f32 %v1208, %v1240
          %v1273 = vadd.f32 %v1209, %v1241
          %v1274 = vadd.f32 %v1210, %v1242
          %v1275 = vadd.f32 %v1211, %v1243
          %v1276 = vadd.f32 %v1212, %v1244
          %v1277 = vadd.f32 %v1213, %v1245
          %v1278 = vadd.f32 %v1214, %v1246
          %v1279 = vadd.f32 %v1215, %v1247
          %v1280 = vadd.f32 %v1216, %v1248
          %v1281 = vadd.f32 %v1217, %v1249
          %v1282 = vadd.f32 %v1218, %v1250
          %v1283 = vadd.f32 %v1219, %v1251
          %v1284 = vadd.f32 %v1220, %v1252
          %v1285 = vadd.f32 %v1221, %v1253
          %v1286 = vadd.f32 %v1222, %v1254
          %v1287 = vadd.f32 %v1223, %v1255
          %v1288 = vadd.f32 %v1224, %v1256
          %v1289 = vadd.f32 %v1225, %v1257
          %v1290 = vadd.f32 %v1226, %v1258
          %v1291 = vadd.f32 %v1227, %v1259
          %v1292 = vadd.f32 %v1228, %v1260
          %v1293 = vadd.f32 %v1229, %v1261
          %v1294 = vadd.f32 %v1230, %v1262
          %v1295 = vadd.f32 %v1231, %v1263
          %v1296 = vadd.f32 %v1232, %v1264
          %v1297 = vadd.f32 %v1233, %v1265
          %v1298 = vadd.f32 %v1234, %v1266
          %v1299 = vpack.c.bf16 %v1268, %v1267
          %v1300 = vpack.c.bf16 %v1270, %v1269
          %v1301 = vpack.c.bf16 %v1272, %v1271
          %v1302 = vpack.c.bf16 %v1274, %v1273
          %v1303 = vpack.c.bf16 %v1276, %v1275
          %v1304 = vpack.c.bf16 %v1278, %v1277
          %v1305 = vpack.c.bf16 %v1280, %v1279
          %v1306 = vpack.c.bf16 %v1282, %v1281
          %v1307 = vpack.c.bf16 %v1284, %v1283
          %v1308 = vpack.c.bf16 %v1286, %v1285
          %v1309 = vpack.c.bf16 %v1288, %v1287
          %v1310 = vpack.c.bf16 %v1290, %v1289
          %v1311 = vpack.c.bf16 %v1292, %v1291
          %v1312 = vpack.c.bf16 %v1294, %v1293
          %v1313 = vpack.c.bf16 %v1296, %v1295
          %v1314 = vpack.c.bf16 %v1298, %v1297
          %v1315 = vld [vmem:[%s395] sm:$0xf]
          %v1316 = vld [vmem:[%s395 + $0x4] sm:$0xf]
          %v1317 = vld [vmem:[%s395 + $0x8] sm:$0xf]
          %v1318 = vld [vmem:[%s395 + $0xc] sm:$0xf]
          %v1319 = vld [vmem:[%s395 + $0x10] sm:$0xf]
          %v1320 = vld [vmem:[%s395 + $0x14] sm:$0xf]
          %v1321 = vld [vmem:[%s395 + $0x18] sm:$0xf]
          %v1322 = vld [vmem:[%s395 + $0x1c] sm:$0xf]
          %v1323 = vld [vmem:[%s395 + $0x20] sm:$0xf]
          %v1324 = vld [vmem:[%s395 + $0x24] sm:$0xf]
          %v1325 = vld [vmem:[%s395 + $0x28] sm:$0xf]
          %v1326 = vld [vmem:[%s395 + $0x2c] sm:$0xf]
          %v1327 = vld [vmem:[%s395 + $0x30] sm:$0xf]
          %v1328 = vld [vmem:[%s395 + $0x34] sm:$0xf]
          %v1329 = vld [vmem:[%s395 + $0x38] sm:$0xf]
          %v1330 = vld [vmem:[%s395 + $0x3c] sm:$0xf]
          %v1331 = vld [vmem:[%s462] sm:$0x1]
          %v1333 = vlaneseq
          %v1334 = vshrl.u32 %v1333, 7
          %v1335 = vsub.s32 0, %v1334
          %v1336 = vrot.slane %v1331, %v1335
          %v1354 = vunpack.c.l.b16 %v1315
          %v1355 = vunpack.c.l.b16 %v1316
          %v1356 = vunpack.c.l.b16 %v1317
          %v1357 = vunpack.c.l.b16 %v1318
          %v1358 = vunpack.c.l.b16 %v1319
          %v1359 = vunpack.c.l.b16 %v1320
          %v1360 = vunpack.c.l.b16 %v1321
          %v1361 = vunpack.c.l.b16 %v1322
          %v1362 = vunpack.c.l.b16 %v1323
          %v1363 = vunpack.c.l.b16 %v1324
          %v1364 = vunpack.c.l.b16 %v1325
          %v1365 = vunpack.c.l.b16 %v1326
          %v1366 = vunpack.c.l.b16 %v1327
          %v1367 = vunpack.c.l.b16 %v1328
          %v1368 = vunpack.c.l.b16 %v1329
          %v1369 = vunpack.c.l.b16 %v1330
          %v1370 = vpack.c.b16 %v1355, %v1354
          %v1371 = vpack.c.b16 %v1357, %v1356
          %v1372 = vpack.c.b16 %v1359, %v1358
          %v1373 = vpack.c.b16 %v1361, %v1360
          %v1374 = vpack.c.b16 %v1363, %v1362
          %v1375 = vpack.c.b16 %v1365, %v1364
          %v1376 = vpack.c.b16 %v1367, %v1366
          %v1377 = vpack.c.b16 %v1369, %v1368
          %1386 = vmatprep.subr.bf16.mxu0 0
          %1387 = vmatpush1.bf16.msra.mxu0 %v1377
          %1388 = vmatprep.subr.bf16.mxu0 0
          %1389 = vmatpush1.bf16.msra.mxu0 %v1376
          %1390 = vmatprep.subr.bf16.mxu0 0
          %1391 = vmatpush1.bf16.msra.mxu0 %v1375
          %1392 = vmatprep.subr.bf16.mxu0 0
          %1393 = vmatpush1.bf16.msra.mxu0 %v1374
          %1394 = vmatprep.subr.bf16.mxu0 0
          %1395 = vmatpush1.bf16.msra.mxu0 %v1373
          %1396 = vmatprep.subr.bf16.mxu0 0
          %1397 = vmatpush1.bf16.msra.mxu0 %v1372
          %1398 = vmatprep.subr.bf16.mxu0 0
          %1399 = vmatpush1.bf16.msra.mxu0 %v1371
          %1400 = vmatprep.subr.bf16.mxu0 0
          %1401 = vmatpush1.bf16.msra.mxu0 %v1370
          %1402 = vmatprep.subr.bf16.mxu0 0
          %1403 = vmatpush2.bf16.msra.mxu0 0
          %1404 = vmatprep.subr.bf16.mxu0 0
          %1405 = vmatpush2.bf16.msra.mxu0 0
          %1406 = vmatprep.subr.bf16.mxu0 0
          %1407 = vmatpush2.bf16.msra.mxu0 0
          %1408 = vmatprep.subr.bf16.mxu0 0
          %1409 = vmatpush2.bf16.msra.mxu0 0
          %1410 = vmatprep.subr.bf16.mxu0 0
          %1411 = vmatpush2.bf16.msra.mxu0 0
          %1412 = vmatprep.subr.bf16.mxu0 0
          %1413 = vmatpush2.bf16.msra.mxu0 0
          %1414 = vmatprep.subr.bf16.mxu0 0
          %1415 = vmatpush2.bf16.msra.mxu0 0
          %1416 = vmatprep.subr.bf16.mxu0 0
          %1417 = vmatpush2.bf16.msra.mxu0 0
          %1418 = vmatprep.mubr.bf16.mxu0 0
          %1419 = vmatmul.mubr.bf16.gmra.mxu0 %v1299
          %v1420 = vpop.f32.mrf.mxu0
          %v1421 = vadd.f32 %v1336, %v1420
          %v1422 = vpop.f32.mrf.mxu0
          %v1423 = vpop.f32.mrf.mxu0
          %v1424 = vadd.f32 %v1336, %v1423
          %v1425 = vpop.f32.mrf.mxu0
          %1426 = vmatprep.mubr.bf16.mxu0 0
          %1427 = vmatmul.mubr.bf16.gmra.mxu0 %v1300
          %v1428 = vpop.f32.mrf.mxu0
          %v1429 = vadd.f32 %v1336, %v1428
          %v1430 = vpop.f32.mrf.mxu0
          %v1431 = vpop.f32.mrf.mxu0
          %v1432 = vadd.f32 %v1336, %v1431
          %v1433 = vpop.f32.mrf.mxu0
          %1434 = vmatprep.mubr.bf16.mxu0 0
          %1435 = vmatmul.mubr.bf16.gmra.mxu0 %v1301
          %v1436 = vpop.f32.mrf.mxu0
          %v1437 = vadd.f32 %v1336, %v1436
          %v1438 = vpop.f32.mrf.mxu0
          %v1439 = vpop.f32.mrf.mxu0
          %v1440 = vadd.f32 %v1336, %v1439
          %v1441 = vpop.f32.mrf.mxu0
          %1442 = vmatprep.mubr.bf16.mxu0 0
          %1443 = vmatmul.mubr.bf16.gmra.mxu0 %v1302
          %v1444 = vpop.f32.mrf.mxu0
          %v1445 = vadd.f32 %v1336, %v1444
          %v1446 = vpop.f32.mrf.mxu0
          %v1447 = vpop.f32.mrf.mxu0
          %v1448 = vadd.f32 %v1336, %v1447
          %v1449 = vpop.f32.mrf.mxu0
          %1450 = vmatprep.mubr.bf16.mxu0 0
          %1451 = vmatmul.mubr.bf16.gmra.mxu0 %v1303
          %v1452 = vpop.f32.mrf.mxu0
          %v1453 = vadd.f32 %v1336, %v1452
          %v1454 = vpop.f32.mrf.mxu0
          %v1455 = vpop.f32.mrf.mxu0
          %v1456 = vadd.f32 %v1336, %v1455
          %v1457 = vpop.f32.mrf.mxu0
          %1458 = vmatprep.mubr.bf16.mxu0 0
          %1459 = vmatmul.mubr.bf16.gmra.mxu0 %v1304
          %v1460 = vpop.f32.mrf.mxu0
          %v1461 = vadd.f32 %v1336, %v1460
          %v1462 = vpop.f32.mrf.mxu0
          %v1463 = vpop.f32.mrf.mxu0
          %v1464 = vadd.f32 %v1336, %v1463
          %v1465 = vpop.f32.mrf.mxu0
          %1466 = vmatprep.mubr.bf16.mxu0 0
          %1467 = vmatmul.mubr.bf16.gmra.mxu0 %v1305
          %v1468 = vpop.f32.mrf.mxu0
          %v1469 = vadd.f32 %v1336, %v1468
          %v1470 = vpop.f32.mrf.mxu0
          %v1471 = vpop.f32.mrf.mxu0
          %v1472 = vadd.f32 %v1336, %v1471
          %v1473 = vpop.f32.mrf.mxu0
          %1474 = vmatprep.mubr.bf16.mxu0 0
          %1475 = vmatmul.mubr.bf16.gmra.mxu0 %v1306
          %v1476 = vpop.f32.mrf.mxu0
          %v1477 = vadd.f32 %v1336, %v1476
          %v1478 = vpop.f32.mrf.mxu0
          %v1479 = vpop.f32.mrf.mxu0
          %v1480 = vadd.f32 %v1336, %v1479
          %v1481 = vpop.f32.mrf.mxu0
          %1482 = vmatprep.mubr.bf16.mxu0 0
          %1483 = vmatmul.mubr.bf16.gmra.mxu0 %v1307
          %v1484 = vpop.f32.mrf.mxu0
          %v1485 = vadd.f32 %v1336, %v1484
          %v1486 = vpop.f32.mrf.mxu0
          %v1487 = vpop.f32.mrf.mxu0
          %v1488 = vadd.f32 %v1336, %v1487
          %v1489 = vpop.f32.mrf.mxu0
          %1490 = vmatprep.mubr.bf16.mxu0 0
          %1491 = vmatmul.mubr.bf16.gmra.mxu0 %v1308
          %v1492 = vpop.f32.mrf.mxu0
          %v1493 = vadd.f32 %v1336, %v1492
          %v1494 = vpop.f32.mrf.mxu0
          %v1495 = vpop.f32.mrf.mxu0
          %v1496 = vadd.f32 %v1336, %v1495
          %v1497 = vpop.f32.mrf.mxu0
          %1498 = vmatprep.mubr.bf16.mxu0 0
          %1499 = vmatmul.mubr.bf16.gmra.mxu0 %v1309
          %v1500 = vpop.f32.mrf.mxu0
          %v1501 = vadd.f32 %v1336, %v1500
          %v1502 = vpop.f32.mrf.mxu0
          %v1503 = vpop.f32.mrf.mxu0
          %v1504 = vadd.f32 %v1336, %v1503
          %v1505 = vpop.f32.mrf.mxu0
          %1506 = vmatprep.mubr.bf16.mxu0 0
          %1507 = vmatmul.mubr.bf16.gmra.mxu0 %v1310
          %v1508 = vpop.f32.mrf.mxu0
          %v1509 = vadd.f32 %v1336, %v1508
          %v1510 = vpop.f32.mrf.mxu0
          %v1511 = vpop.f32.mrf.mxu0
          %v1512 = vadd.f32 %v1336, %v1511
          %v1513 = vpop.f32.mrf.mxu0
          %1514 = vmatprep.mubr.bf16.mxu0 0
          %1515 = vmatmul.mubr.bf16.gmra.mxu0 %v1311
          %v1516 = vpop.f32.mrf.mxu0
          %v1517 = vadd.f32 %v1336, %v1516
          %v1518 = vpop.f32.mrf.mxu0
          %v1519 = vpop.f32.mrf.mxu0
          %v1520 = vadd.f32 %v1336, %v1519
          %v1521 = vpop.f32.mrf.mxu0
          %1522 = vmatprep.mubr.bf16.mxu0 0
          %1523 = vmatmul.mubr.bf16.gmra.mxu0 %v1312
          %v1524 = vpop.f32.mrf.mxu0
          %v1525 = vadd.f32 %v1336, %v1524
          %v1526 = vpop.f32.mrf.mxu0
          %v1527 = vpop.f32.mrf.mxu0
          %v1528 = vadd.f32 %v1336, %v1527
          %v1529 = vpop.f32.mrf.mxu0
          %1530 = vmatprep.mubr.bf16.mxu0 0
          %1531 = vmatmul.mubr.bf16.gmra.mxu0 %v1313
          %v1532 = vpop.f32.mrf.mxu0
          %v1533 = vadd.f32 %v1336, %v1532
          %v1534 = vpop.f32.mrf.mxu0
          %v1535 = vpop.f32.mrf.mxu0
          %v1536 = vadd.f32 %v1336, %v1535
          %v1537 = vpop.f32.mrf.mxu0
          %1538 = vmatprep.mubr.bf16.mxu0 0
          %1539 = vmatmul.mubr.bf16.gmra.mxu0 %v1314
          %v1540 = vpop.f32.mrf.mxu0
          %v1541 = vadd.f32 %v1336, %v1540
          %v1542 = vpop.f32.mrf.mxu0
          %v1543 = vpop.f32.mrf.mxu0
          %v1544 = vadd.f32 %v1336, %v1543
          %v1545 = vpop.f32.mrf.mxu0
          %1546 = vdwg.mxu0
          %v1547 = vmax.f32 %v1421, 0.0
          %v1548 = vmax.f32 %v1424, 0.0
          %v1549 = vmax.f32 %v1429, 0.0
          %v1550 = vmax.f32 %v1432, 0.0
          %v1551 = vmax.f32 %v1437, 0.0
          %v1552 = vmax.f32 %v1440, 0.0
          %v1553 = vmax.f32 %v1445, 0.0
          %v1554 = vmax.f32 %v1448, 0.0
          %v1555 = vmax.f32 %v1453, 0.0
          %v1556 = vmax.f32 %v1456, 0.0
          %v1557 = vmax.f32 %v1461, 0.0
          %v1558 = vmax.f32 %v1464, 0.0
          %v1559 = vmax.f32 %v1469, 0.0
          %v1560 = vmax.f32 %v1472, 0.0
          %v1561 = vmax.f32 %v1477, 0.0
          %v1562 = vmax.f32 %v1480, 0.0
          %v1563 = vmax.f32 %v1485, 0.0
          %v1564 = vmax.f32 %v1488, 0.0
          %v1565 = vmax.f32 %v1493, 0.0
          %v1566 = vmax.f32 %v1496, 0.0
          %v1567 = vmax.f32 %v1501, 0.0
          %v1568 = vmax.f32 %v1504, 0.0
          %v1569 = vmax.f32 %v1509, 0.0
          %v1570 = vmax.f32 %v1512, 0.0
          %v1571 = vmax.f32 %v1517, 0.0
          %v1572 = vmax.f32 %v1520, 0.0
          %v1573 = vmax.f32 %v1525, 0.0
          %v1574 = vmax.f32 %v1528, 0.0
          %v1575 = vmax.f32 %v1533, 0.0
          %v1576 = vmax.f32 %v1536, 0.0
          %v1577 = vmax.f32 %v1541, 0.0
          %v1578 = vmax.f32 %v1544, 0.0
          %v1579 = vpack.c.bf16 %v1548, %v1547
          %v1580 = vpack.c.bf16 %v1550, %v1549
          %v1581 = vpack.c.bf16 %v1552, %v1551
          %v1582 = vpack.c.bf16 %v1554, %v1553
          %v1583 = vpack.c.bf16 %v1556, %v1555
          %v1584 = vpack.c.bf16 %v1558, %v1557
          %v1585 = vpack.c.bf16 %v1560, %v1559
          %v1586 = vpack.c.bf16 %v1562, %v1561
          %v1587 = vpack.c.bf16 %v1564, %v1563
          %v1588 = vpack.c.bf16 %v1566, %v1565
          %v1589 = vpack.c.bf16 %v1568, %v1567
          %v1590 = vpack.c.bf16 %v1570, %v1569
          %v1591 = vpack.c.bf16 %v1572, %v1571
          %v1592 = vpack.c.bf16 %v1574, %v1573
          %v1593 = vpack.c.bf16 %v1576, %v1575
          %v1594 = vpack.c.bf16 %v1578, %v1577
          %v1595 = vld [vmem:[%s404] sm:$0xf]
          %v1596 = vld [vmem:[%s404 + $0x4] sm:$0xf]
          %v1597 = vld [vmem:[%s404 + $0x8] sm:$0xf]
          %v1598 = vld [vmem:[%s404 + $0xc] sm:$0xf]
          %v1599 = vld [vmem:[%s404 + $0x10] sm:$0xf]
          %v1600 = vld [vmem:[%s404 + $0x14] sm:$0xf]
          %v1601 = vld [vmem:[%s404 + $0x18] sm:$0xf]
          %v1602 = vld [vmem:[%s404 + $0x1c] sm:$0xf]
          %v1603 = vld [vmem:[%s404 + $0x20] sm:$0xf]
          %v1604 = vld [vmem:[%s404 + $0x24] sm:$0xf]
          %v1605 = vld [vmem:[%s404 + $0x28] sm:$0xf]
          %v1606 = vld [vmem:[%s404 + $0x2c] sm:$0xf]
          %v1607 = vld [vmem:[%s404 + $0x30] sm:$0xf]
          %v1608 = vld [vmem:[%s404 + $0x34] sm:$0xf]
          %v1609 = vld [vmem:[%s404 + $0x38] sm:$0xf]
          %v1610 = vld [vmem:[%s404 + $0x3c] sm:$0xf]
          %v1611 = vld [vmem:[%s465] sm:$0x1]
          %v1613 = vlaneseq
          %v1614 = vshrl.u32 %v1613, 7
          %v1615 = vsub.s32 0, %v1614
          %v1616 = vrot.slane %v1611, %v1615
          %v1634 = vunpack.c.l.b16 %v1595
          %v1635 = vunpack.c.l.b16 %v1596
          %v1636 = vunpack.c.l.b16 %v1597
          %v1637 = vunpack.c.l.b16 %v1598
          %v1638 = vunpack.c.l.b16 %v1599
          %v1639 = vunpack.c.l.b16 %v1600
          %v1640 = vunpack.c.l.b16 %v1601
          %v1641 = vunpack.c.l.b16 %v1602
          %v1642 = vunpack.c.l.b16 %v1603
          %v1643 = vunpack.c.l.b16 %v1604
          %v1644 = vunpack.c.l.b16 %v1605
          %v1645 = vunpack.c.l.b16 %v1606
          %v1646 = vunpack.c.l.b16 %v1607
          %v1647 = vunpack.c.l.b16 %v1608
          %v1648 = vunpack.c.l.b16 %v1609
          %v1649 = vunpack.c.l.b16 %v1610
          %v1650 = vpack.c.b16 %v1635, %v1634
          %v1651 = vpack.c.b16 %v1637, %v1636
          %v1652 = vpack.c.b16 %v1639, %v1638
          %v1653 = vpack.c.b16 %v1641, %v1640
          %v1654 = vpack.c.b16 %v1643, %v1642
          %v1655 = vpack.c.b16 %v1645, %v1644
          %v1656 = vpack.c.b16 %v1647, %v1646
          %v1657 = vpack.c.b16 %v1649, %v1648
          %1666 = vmatprep.subr.bf16.mxu0 0
          %1667 = vmatpush1.bf16.msra.mxu0 %v1657
          %1668 = vmatprep.subr.bf16.mxu0 0
          %1669 = vmatpush1.bf16.msra.mxu0 %v1656
          %1670 = vmatprep.subr.bf16.mxu0 0
          %1671 = vmatpush1.bf16.msra.mxu0 %v1655
          %1672 = vmatprep.subr.bf16.mxu0 0
          %1673 = vmatpush1.bf16.msra.mxu0 %v1654
          %1674 = vmatprep.subr.bf16.mxu0 0
          %1675 = vmatpush1.bf16.msra.mxu0 %v1653
          %1676 = vmatprep.subr.bf16.mxu0 0
          %1677 = vmatpush1.bf16.msra.mxu0 %v1652
          %1678 = vmatprep.subr.bf16.mxu0 0
          %1679 = vmatpush1.bf16.msra.mxu0 %v1651
          %1680 = vmatprep.subr.bf16.mxu0 0
          %1681 = vmatpush1.bf16.msra.mxu0 %v1650
          %1682 = vmatprep.subr.bf16.mxu0 0
          %1683 = vmatpush2.bf16.msra.mxu0 0
          %1684 = vmatprep.subr.bf16.mxu0 0
          %1685 = vmatpush2.bf16.msra.mxu0 0
          %1686 = vmatprep.subr.bf16.mxu0 0
          %1687 = vmatpush2.bf16.msra.mxu0 0
          %1688 = vmatprep.subr.bf16.mxu0 0
          %1689 = vmatpush2.bf16.msra.mxu0 0
          %1690 = vmatprep.subr.bf16.mxu0 0
          %1691 = vmatpush2.bf16.msra.mxu0 0
          %1692 = vmatprep.subr.bf16.mxu0 0
          %1693 = vmatpush2.bf16.msra.mxu0 0
          %1694 = vmatprep.subr.bf16.mxu0 0
          %1695 = vmatpush2.bf16.msra.mxu0 0
          %1696 = vmatprep.subr.bf16.mxu0 0
          %1697 = vmatpush2.bf16.msra.mxu0 0
          %1698 = vmatprep.mubr.bf16.mxu0 0
          %1699 = vmatmul.mubr.bf16.gmra.mxu0 %v1579
          %v1700 = vpop.f32.mrf.mxu0
          %v1701 = vadd.f32 %v1616, %v1700
          %v1702 = vpop.f32.mrf.mxu0
          %v1703 = vpop.f32.mrf.mxu0
          %v1704 = vadd.f32 %v1616, %v1703
          %v1705 = vpop.f32.mrf.mxu0
          %1706 = vmatprep.mubr.bf16.mxu0 0
          %1707 = vmatmul.mubr.bf16.gmra.mxu0 %v1580
          %v1708 = vpop.f32.mrf.mxu0
          %v1709 = vadd.f32 %v1616, %v1708
          %v1710 = vpop.f32.mrf.mxu0
          %v1711 = vpop.f32.mrf.mxu0
          %v1712 = vadd.f32 %v1616, %v1711
          %v1713 = vpop.f32.mrf.mxu0
          %1714 = vmatprep.mubr.bf16.mxu0 0
          %1715 = vmatmul.mubr.bf16.gmra.mxu0 %v1581
          %v1716 = vpop.f32.mrf.mxu0
          %v1717 = vadd.f32 %v1616, %v1716
          %v1718 = vpop.f32.mrf.mxu0
          %v1719 = vpop.f32.mrf.mxu0
          %v1720 = vadd.f32 %v1616, %v1719
          %v1721 = vpop.f32.mrf.mxu0
          %1722 = vmatprep.mubr.bf16.mxu0 0
          %1723 = vmatmul.mubr.bf16.gmra.mxu0 %v1582
          %v1724 = vpop.f32.mrf.mxu0
          %v1725 = vadd.f32 %v1616, %v1724
          %v1726 = vpop.f32.mrf.mxu0
          %v1727 = vpop.f32.mrf.mxu0
          %v1728 = vadd.f32 %v1616, %v1727
          %v1729 = vpop.f32.mrf.mxu0
          %1730 = vmatprep.mubr.bf16.mxu0 0
          %1731 = vmatmul.mubr.bf16.gmra.mxu0 %v1583
          %v1732 = vpop.f32.mrf.mxu0
          %v1733 = vadd.f32 %v1616, %v1732
          %v1734 = vpop.f32.mrf.mxu0
          %v1735 = vpop.f32.mrf.mxu0
          %v1736 = vadd.f32 %v1616, %v1735
          %v1737 = vpop.f32.mrf.mxu0
          %1738 = vmatprep.mubr.bf16.mxu0 0
          %1739 = vmatmul.mubr.bf16.gmra.mxu0 %v1584
          %v1740 = vpop.f32.mrf.mxu0
          %v1741 = vadd.f32 %v1616, %v1740
          %v1742 = vpop.f32.mrf.mxu0
          %v1743 = vpop.f32.mrf.mxu0
          %v1744 = vadd.f32 %v1616, %v1743
          %v1745 = vpop.f32.mrf.mxu0
          %1746 = vmatprep.mubr.bf16.mxu0 0
          %1747 = vmatmul.mubr.bf16.gmra.mxu0 %v1585
          %v1748 = vpop.f32.mrf.mxu0
          %v1749 = vadd.f32 %v1616, %v1748
          %v1750 = vpop.f32.mrf.mxu0
          %v1751 = vpop.f32.mrf.mxu0
          %v1752 = vadd.f32 %v1616, %v1751
          %v1753 = vpop.f32.mrf.mxu0
          %1754 = vmatprep.mubr.bf16.mxu0 0
          %1755 = vmatmul.mubr.bf16.gmra.mxu0 %v1586
          %v1756 = vpop.f32.mrf.mxu0
          %v1757 = vadd.f32 %v1616, %v1756
          %v1758 = vpop.f32.mrf.mxu0
          %v1759 = vpop.f32.mrf.mxu0
          %v1760 = vadd.f32 %v1616, %v1759
          %v1761 = vpop.f32.mrf.mxu0
          %1762 = vmatprep.mubr.bf16.mxu0 0
          %1763 = vmatmul.mubr.bf16.gmra.mxu0 %v1587
          %v1764 = vpop.f32.mrf.mxu0
          %v1765 = vadd.f32 %v1616, %v1764
          %v1766 = vpop.f32.mrf.mxu0
          %v1767 = vpop.f32.mrf.mxu0
          %v1768 = vadd.f32 %v1616, %v1767
          %v1769 = vpop.f32.mrf.mxu0
          %1770 = vmatprep.mubr.bf16.mxu0 0
          %1771 = vmatmul.mubr.bf16.gmra.mxu0 %v1588
          %v1772 = vpop.f32.mrf.mxu0
          %v1773 = vadd.f32 %v1616, %v1772
          %v1774 = vpop.f32.mrf.mxu0
          %v1775 = vpop.f32.mrf.mxu0
          %v1776 = vadd.f32 %v1616, %v1775
          %v1777 = vpop.f32.mrf.mxu0
          %1778 = vmatprep.mubr.bf16.mxu0 0
          %1779 = vmatmul.mubr.bf16.gmra.mxu0 %v1589
          %v1780 = vpop.f32.mrf.mxu0
          %v1781 = vadd.f32 %v1616, %v1780
          %v1782 = vpop.f32.mrf.mxu0
          %v1783 = vpop.f32.mrf.mxu0
          %v1784 = vadd.f32 %v1616, %v1783
          %v1785 = vpop.f32.mrf.mxu0
          %1786 = vmatprep.mubr.bf16.mxu0 0
          %1787 = vmatmul.mubr.bf16.gmra.mxu0 %v1590
          %v1788 = vpop.f32.mrf.mxu0
          %v1789 = vadd.f32 %v1616, %v1788
          %v1790 = vpop.f32.mrf.mxu0
          %v1791 = vpop.f32.mrf.mxu0
          %v1792 = vadd.f32 %v1616, %v1791
          %v1793 = vpop.f32.mrf.mxu0
          %1794 = vmatprep.mubr.bf16.mxu0 0
          %1795 = vmatmul.mubr.bf16.gmra.mxu0 %v1591
          %v1796 = vpop.f32.mrf.mxu0
          %v1797 = vadd.f32 %v1616, %v1796
          %v1798 = vpop.f32.mrf.mxu0
          %v1799 = vpop.f32.mrf.mxu0
          %v1800 = vadd.f32 %v1616, %v1799
          %v1801 = vpop.f32.mrf.mxu0
          %1802 = vmatprep.mubr.bf16.mxu0 0
          %1803 = vmatmul.mubr.bf16.gmra.mxu0 %v1592
          %v1804 = vpop.f32.mrf.mxu0
          %v1805 = vadd.f32 %v1616, %v1804
          %v1806 = vpop.f32.mrf.mxu0
          %v1807 = vpop.f32.mrf.mxu0
          %v1808 = vadd.f32 %v1616, %v1807
          %v1809 = vpop.f32.mrf.mxu0
          %1810 = vmatprep.mubr.bf16.mxu0 0
          %1811 = vmatmul.mubr.bf16.gmra.mxu0 %v1593
          %v1812 = vpop.f32.mrf.mxu0
          %v1813 = vadd.f32 %v1616, %v1812
          %v1814 = vpop.f32.mrf.mxu0
          %v1815 = vpop.f32.mrf.mxu0
          %v1816 = vadd.f32 %v1616, %v1815
          %v1817 = vpop.f32.mrf.mxu0
          %1818 = vmatprep.mubr.bf16.mxu0 0
          %1819 = vmatmul.mubr.bf16.gmra.mxu0 %v1594
          %v1820 = vpop.f32.mrf.mxu0
          %v1821 = vadd.f32 %v1616, %v1820
          %v1822 = vpop.f32.mrf.mxu0
          %v1823 = vpop.f32.mrf.mxu0
          %v1824 = vadd.f32 %v1616, %v1823
          %v1825 = vpop.f32.mrf.mxu0
          %1826 = vdwg.mxu0
          %v1827 = vmax.f32 %v1701, 0.0
          %v1828 = vmax.f32 %v1704, 0.0
          %v1829 = vmax.f32 %v1709, 0.0
          %v1830 = vmax.f32 %v1712, 0.0
          %v1831 = vmax.f32 %v1717, 0.0
          %v1832 = vmax.f32 %v1720, 0.0
          %v1833 = vmax.f32 %v1725, 0.0
          %v1834 = vmax.f32 %v1728, 0.0
          %v1835 = vmax.f32 %v1733, 0.0
          %v1836 = vmax.f32 %v1736, 0.0
          %v1837 = vmax.f32 %v1741, 0.0
          %v1838 = vmax.f32 %v1744, 0.0
          %v1839 = vmax.f32 %v1749, 0.0
          %v1840 = vmax.f32 %v1752, 0.0
          %v1841 = vmax.f32 %v1757, 0.0
          %v1842 = vmax.f32 %v1760, 0.0
          %v1843 = vmax.f32 %v1765, 0.0
          %v1844 = vmax.f32 %v1768, 0.0
          %v1845 = vmax.f32 %v1773, 0.0
          %v1846 = vmax.f32 %v1776, 0.0
          %v1847 = vmax.f32 %v1781, 0.0
          %v1848 = vmax.f32 %v1784, 0.0
          %v1849 = vmax.f32 %v1789, 0.0
          %v1850 = vmax.f32 %v1792, 0.0
          %v1851 = vmax.f32 %v1797, 0.0
          %v1852 = vmax.f32 %v1800, 0.0
          %v1853 = vmax.f32 %v1805, 0.0
          %v1854 = vmax.f32 %v1808, 0.0
          %v1855 = vmax.f32 %v1813, 0.0
          %v1856 = vmax.f32 %v1816, 0.0
          %v1857 = vmax.f32 %v1821, 0.0
          %v1858 = vmax.f32 %v1824, 0.0
          %v1859 = vpack.c.bf16 %v1828, %v1827
          %v1860 = vpack.c.bf16 %v1830, %v1829
          %v1861 = vpack.c.bf16 %v1832, %v1831
          %v1862 = vpack.c.bf16 %v1834, %v1833
          %v1863 = vpack.c.bf16 %v1836, %v1835
          %v1864 = vpack.c.bf16 %v1838, %v1837
          %v1865 = vpack.c.bf16 %v1840, %v1839
          %v1866 = vpack.c.bf16 %v1842, %v1841
          %v1867 = vpack.c.bf16 %v1844, %v1843
          %v1868 = vpack.c.bf16 %v1846, %v1845
          %v1869 = vpack.c.bf16 %v1848, %v1847
          %v1870 = vpack.c.bf16 %v1850, %v1849
          %v1871 = vpack.c.bf16 %v1852, %v1851
          %v1872 = vpack.c.bf16 %v1854, %v1853
          %v1873 = vpack.c.bf16 %v1856, %v1855
          %v1874 = vpack.c.bf16 %v1858, %v1857
          %v1891 = vunpack.c.l.b16 %v1859
          %v1892 = vunpack.c.h.b16 %v1859
          %v1893 = vunpack.c.l.b16 %v1860
          %v1894 = vunpack.c.h.b16 %v1860
          %v1895 = vunpack.c.l.b16 %v1861
          %v1896 = vunpack.c.h.b16 %v1861
          %v1897 = vunpack.c.l.b16 %v1862
          %v1898 = vunpack.c.h.b16 %v1862
          %v1899 = vunpack.c.l.b16 %v1863
          %v1900 = vunpack.c.h.b16 %v1863
          %v1901 = vunpack.c.l.b16 %v1864
          %v1902 = vunpack.c.h.b16 %v1864
          %v1903 = vunpack.c.l.b16 %v1865
          %v1904 = vunpack.c.h.b16 %v1865
          %v1905 = vunpack.c.l.b16 %v1866
          %v1906 = vunpack.c.h.b16 %v1866
          %v1907 = vunpack.c.l.b16 %v1867
          %v1908 = vunpack.c.h.b16 %v1867
          %v1909 = vunpack.c.l.b16 %v1868
          %v1910 = vunpack.c.h.b16 %v1868
          %v1911 = vunpack.c.l.b16 %v1869
          %v1912 = vunpack.c.h.b16 %v1869
          %v1913 = vunpack.c.l.b16 %v1870
          %v1914 = vunpack.c.h.b16 %v1870
          %v1915 = vunpack.c.l.b16 %v1871
          %v1916 = vunpack.c.h.b16 %v1871
          %v1917 = vunpack.c.l.b16 %v1872
          %v1918 = vunpack.c.h.b16 %v1872
          %v1919 = vunpack.c.l.b16 %v1873
          %v1920 = vunpack.c.h.b16 %v1873
          %v1921 = vunpack.c.l.b16 %v1874
          %v1922 = vunpack.c.h.b16 %v1874
          %v1923 = vpack.c.b16 %v1891, %v1891
          %v1924 = vpack.c.b16 %v1892, %v1892
          %v1925 = vpack.c.b16 %v1893, %v1893
          %v1926 = vpack.c.b16 %v1894, %v1894
          %v1927 = vpack.c.b16 %v1895, %v1895
          %v1928 = vpack.c.b16 %v1896, %v1896
          %v1929 = vpack.c.b16 %v1897, %v1897
          %v1930 = vpack.c.b16 %v1898, %v1898
          %v1931 = vpack.c.b16 %v1899, %v1899
          %v1932 = vpack.c.b16 %v1900, %v1900
          %v1933 = vpack.c.b16 %v1901, %v1901
          %v1934 = vpack.c.b16 %v1902, %v1902
          %v1935 = vpack.c.b16 %v1903, %v1903
          %v1936 = vpack.c.b16 %v1904, %v1904
          %v1937 = vpack.c.b16 %v1905, %v1905
          %v1938 = vpack.c.b16 %v1906, %v1906
          %v1939 = vpack.c.b16 %v1907, %v1907
          %v1940 = vpack.c.b16 %v1908, %v1908
          %v1941 = vpack.c.b16 %v1909, %v1909
          %v1942 = vpack.c.b16 %v1910, %v1910
          %v1943 = vpack.c.b16 %v1911, %v1911
          %v1944 = vpack.c.b16 %v1912, %v1912
          %v1945 = vpack.c.b16 %v1913, %v1913
          %v1946 = vpack.c.b16 %v1914, %v1914
          %v1947 = vpack.c.b16 %v1915, %v1915
          %v1948 = vpack.c.b16 %v1916, %v1916
          %v1949 = vpack.c.b16 %v1917, %v1917
          %v1950 = vpack.c.b16 %v1918, %v1918
          %v1951 = vpack.c.b16 %v1919, %v1919
          %v1952 = vpack.c.b16 %v1920, %v1920
          %v1953 = vpack.c.b16 %v1921, %v1921
          %v1954 = vpack.c.b16 %v1922, %v1922
          %s1987 = smul.u32 %s475, 32
          %s1988 = sadd.s32 %s538, %s1987
          %s1989 = smul.addr %s1988, 4
          %s1990 = scalar_lea.vmem [#allocation3], %s1989
          %1991 = vst [vmem:[%s1990] sm:$0xf] %v1923
          %1992 = vst [vmem:[%s1990 + $0x4] sm:$0xf] %v1924
          %1993 = vst [vmem:[%s1990 + $0x8] sm:$0xf] %v1925
          %1994 = vst [vmem:[%s1990 + $0xc] sm:$0xf] %v1926
          %1995 = vst [vmem:[%s1990 + $0x10] sm:$0xf] %v1927
          %1996 = vst [vmem:[%s1990 + $0x14] sm:$0xf] %v1928
          %1997 = vst [vmem:[%s1990 + $0x18] sm:$0xf] %v1929
          %1998 = vst [vmem:[%s1990 + $0x1c] sm:$0xf] %v1930
          %1999 = vst [vmem:[%s1990 + $0x20] sm:$0xf] %v1931
          %2000 = vst [vmem:[%s1990 + $0x24] sm:$0xf] %v1932
          %2001 = vst [vmem:[%s1990 + $0x28] sm:$0xf] %v1933
          %2002 = vst [vmem:[%s1990 + $0x2c] sm:$0xf] %v1934
          %2003 = vst [vmem:[%s1990 + $0x30] sm:$0xf] %v1935
          %2004 = vst [vmem:[%s1990 + $0x34] sm:$0xf] %v1936
          %2005 = vst [vmem:[%s1990 + $0x38] sm:$0xf] %v1937
          %2006 = vst [vmem:[%s1990 + $0x3c] sm:$0xf] %v1938
          %2007 = vst [vmem:[%s1990 + $0x40] sm:$0xf] %v1939
          %2008 = vst [vmem:[%s1990 + $0x44] sm:$0xf] %v1940
          %2009 = vst [vmem:[%s1990 + $0x48] sm:$0xf] %v1941
          %2010 = vst [vmem:[%s1990 + $0x4c] sm:$0xf] %v1942
          %2011 = vst [vmem:[%s1990 + $0x50] sm:$0xf] %v1943
          %2012 = vst [vmem:[%s1990 + $0x54] sm:$0xf] %v1944
          %2013 = vst [vmem:[%s1990 + $0x58] sm:$0xf] %v1945
          %2014 = vst [vmem:[%s1990 + $0x5c] sm:$0xf] %v1946
          %2015 = vst [vmem:[%s1990 + $0x60] sm:$0xf] %v1947
          %2016 = vst [vmem:[%s1990 + $0x64] sm:$0xf] %v1948
          %2017 = vst [vmem:[%s1990 + $0x68] sm:$0xf] %v1949
          %2018 = vst [vmem:[%s1990 + $0x6c] sm:$0xf] %v1950
          %2019 = vst [vmem:[%s1990 + $0x70] sm:$0xf] %v1951
          %2020 = vst [vmem:[%s1990 + $0x74] sm:$0xf] %v1952
          %2021 = vst [vmem:[%s1990 + $0x78] sm:$0xf] %v1953
          %2022 = vst [vmem:[%s1990 + $0x7c] sm:$0xf] %v1954
          %p2023 = scmp.eq.s32.totalorder %s35, 1
          // Predicated region
          $region82: #{tpu_custom_call.1} parent=80 // pred_check
            %p2024 = pneg %p2023
          $region83: #{tpu_custom_call.1} parent=80 // pred_check_branch
            %2026 = sbr.rel (%p2024) target = $region85
          $region84: #{tpu_custom_call.1} parent=80 // pred_region
            %2027 = vst [vmem:[#allocation12] sm:$0xff] %v1827
            %2028 = vst [vmem:[#allocation12 + $0x8] sm:$0xff] %v1828
            %2029 = vst [vmem:[#allocation12 + $0x10] sm:$0xff] %v1829
            %2030 = vst [vmem:[#allocation12 + $0x18] sm:$0xff] %v1830
            %2031 = vst [vmem:[#allocation12 + $0x20] sm:$0xff] %v1831
            %2032 = vst [vmem:[#allocation12 + $0x28] sm:$0xff] %v1832
            %2033 = vst [vmem:[#allocation12 + $0x30] sm:$0xff] %v1833
            %2034 = vst [vmem:[#allocation12 + $0x38] sm:$0xff] %v1834
            %2035 = vst [vmem:[#allocation12 + $0x40] sm:$0xff] %v1835
            %2036 = vst [vmem:[#allocation12 + $0x48] sm:$0xff] %v1836
            %2037 = vst [vmem:[#allocation12 + $0x50] sm:$0xff] %v1837
            %2038 = vst [vmem:[#allocation12 + $0x58] sm:$0xff] %v1838
            %2039 = vst [vmem:[#allocation12 + $0x60] sm:$0xff] %v1839
            %2040 = vst [vmem:[#allocation12 + $0x68] sm:$0xff] %v1840
            %2041 = vst [vmem:[#allocation12 + $0x70] sm:$0xff] %v1841
            %2042 = vst [vmem:[#allocation12 + $0x78] sm:$0xff] %v1842
            %2043 = vst [vmem:[#allocation12 + $0x80] sm:$0xff] %v1843
            %2044 = vst [vmem:[#allocation12 + $0x88] sm:$0xff] %v1844
            %2045 = vst [vmem:[#allocation12 + $0x90] sm:$0xff] %v1845
            %2046 = vst [vmem:[#allocation12 + $0x98] sm:$0xff] %v1846
            %2047 = vst [vmem:[#allocation12 + $0xa0] sm:$0xff] %v1847
            %2048 = vst [vmem:[#allocation12 + $0xa8] sm:$0xff] %v1848
            %2049 = vst [vmem:[#allocation12 + $0xb0] sm:$0xff] %v1849
            %2050 = vst [vmem:[#allocation12 + $0xb8] sm:$0xff] %v1850
            %2051 = vst [vmem:[#allocation12 + $0xc0] sm:$0xff] %v1851
            %2052 = vst [vmem:[#allocation12 + $0xc8] sm:$0xff] %v1852
            %2053 = vst [vmem:[#allocation12 + $0xd0] sm:$0xff] %v1853
            %2054 = vst [vmem:[#allocation12 + $0xd8] sm:$0xff] %v1854
            %2055 = vst [vmem:[#allocation12 + $0xe0] sm:$0xff] %v1855
            %2056 = vst [vmem:[#allocation12 + $0xe8] sm:$0xff] %v1856
            %2057 = vst [vmem:[#allocation12 + $0xf0] sm:$0xff] %v1857
            %2058 = vst [vmem:[#allocation12 + $0xf8] sm:$0xff] %v1858
            %v2059 = vld [vmem:[#allocation13] sm:$0xff]
            %v2060 = vld [vmem:[%s470] sm:$0xff]
            %v2062 = vunpack.c.l.b16 %v2060
            %v2063 = vunpack.c.h.b16 %v2060
            %v2064 = vpack.c.b16 %v2062, %v2062
            %v2065 = vpack.c.b16 %v2063, %v2063
            %2068 = vmatprep.subr.bf16.mxu0 0
            %2069 = vmatpush1.bf16.msra.mxu0 %v1866
            %2070 = vmatprep.subr.bf16.mxu0 0
            %2071 = vmatpush1.bf16.msra.mxu0 %v1865
            %2072 = vmatprep.subr.bf16.mxu0 0
            %2073 = vmatpush1.bf16.msra.mxu0 %v1864
            %2074 = vmatprep.subr.bf16.mxu0 0
            %2075 = vmatpush1.bf16.msra.mxu0 %v1863
            %2076 = vmatprep.subr.bf16.mxu0 0
            %2077 = vmatpush1.bf16.msra.mxu0 %v1862
            %2078 = vmatprep.subr.bf16.mxu0 0
            %2079 = vmatpush1.bf16.msra.mxu0 %v1861
            %2080 = vmatprep.subr.bf16.mxu0 0
            %2081 = vmatpush1.bf16.msra.mxu0 %v1860
            %2082 = vmatprep.subr.bf16.mxu0 0
            %2083 = vmatpush1.bf16.msra.mxu0 %v1859
            %2084 = vmatprep.subr.bf16.mxu0 0
            %2085 = vmatpush2.bf16.msra.mxu0 %v1874
            %2086 = vmatprep.subr.bf16.mxu0 0
            %2087 = vmatpush2.bf16.msra.mxu0 %v1873
            %2088 = vmatprep.subr.bf16.mxu0 0
            %2089 = vmatpush2.bf16.msra.mxu0 %v1872
            %2090 = vmatprep.subr.bf16.mxu0 0
            %2091 = vmatpush2.bf16.msra.mxu0 %v1871
            %2092 = vmatprep.subr.bf16.mxu0 0
            %2093 = vmatpush2.bf16.msra.mxu0 %v1870
            %2094 = vmatprep.subr.bf16.mxu0 0
            %2095 = vmatpush2.bf16.msra.mxu0 %v1869
            %2096 = vmatprep.subr.bf16.mxu0 0
            %2097 = vmatpush2.bf16.msra.mxu0 %v1868
            %2098 = vmatprep.subr.bf16.mxu0 0
            %2099 = vmatpush2.bf16.msra.mxu0 %v1867
            %2100 = vmatprep.mubr.bf16.mxu0 %v2065
            %2101 = vmatmul.mubr.bf16.gmra.mxu0 %v2064
            %v2102 = vpop.f32.mrf.mxu0
            %v2103 = vadd.f32 0.0, %v2102
            %v2104 = vpop.f32.mrf.mxu0
            %v2105 = vpop.f32.mrf.mxu0
            %v2106 = vpop.f32.mrf.mxu0
            %2107 = vdwg.mxu0
            %v2108 = vadd.f32 %v2059, %v2103
            %2109 = vst [vmem:[#allocation13] sm:$0xff] %v2108
          $region85: #{tpu_custom_call.1} parent=80 // pred_fallthru
            _
        $region81: #{tpu_custom_call.1} parent=47 // pred_fallthru
          _
        // Predicated region
        $region86: #{tpu_custom_call.1} parent=47 // pred_check
          %p2110 = pneg %p244
        $region87: #{tpu_custom_call.1} parent=47 // pred_check_branch
          %2112 = sbr.rel (%p2110) target = $region89
        $region88: #{tpu_custom_call.1} parent=47 // pred_region
          %s2113 = smul.u32 32, %s36
          %s2115 = ssub.s32 4096, 4096
          %2116 = vsyncadd [#allocation6], %s2115
          %s2117 = smul.addr %s2113, 128
          %s2118 = scalar_lea.hbm %s8, %s2117
          %s2119 = sshll.u32 [#allocation12], 4
          %s2120 = int_to_ptr.vmem [resolvable:$true] %s2119
          %2125 = dma.vmem_to_hbm [thread:$0]  %s2120, 4096, %s2118, [#allocation6], 128, 128, 8
        $region89: #{tpu_custom_call.1} parent=47 // pred_fallthru
          _
        // Predicated region
        $region90: #{tpu_custom_call.1} parent=47 // pred_check
          %p2126 = pneg %p265
        $region91: #{tpu_custom_call.1} parent=47 // pred_check_branch
          %2128 = sbr.rel (%p2126) target = $region93
        $region92: #{tpu_custom_call.1} parent=47 // pred_region
          %s2130 = ssub.s32 128, 128
          %2131 = vsyncadd [#allocation14], %s2130
          %s2133 = sshll.u32 [#allocation13], 4
          %s2134 = int_to_ptr.vmem [resolvable:$true] %s2133
          %2136 = dma.vmem_to_hbm [thread:$0]  %s2134, 128, %s9, [#allocation14]
        $region93: #{tpu_custom_call.1} parent=47 // pred_fallthru
          _
        // Predicated region
        $region94: #{tpu_custom_call.1} parent=47 // pred_check
          %p2137 = pneg %p244
        $region95: #{tpu_custom_call.1} parent=47 // pred_check_branch
          %2139 = sbr.rel (%p2137) target = $region97
        $region96: #{tpu_custom_call.1} parent=47 // pred_region
          %2140 = dma.done [#allocation6], 4096
        $region97: #{tpu_custom_call.1} parent=47 // pred_fallthru
          _
        // Predicated region
        $region98: #{tpu_custom_call.1} parent=47 // pred_check
          %p2141 = pneg %p265
        $region99: #{tpu_custom_call.1} parent=47 // pred_check_branch
          %2143 = sbr.rel (%p2141) target = $region101
        $region100: #{tpu_custom_call.1} parent=47 // pred_region
          %2144 = dma.done [#allocation14], 128
        $region101: #{tpu_custom_call.1} parent=47 // pred_fallthru
          _
      $region48: #{tpu_custom_call.1} parent=5 // pred_fallthru
        _
      %p2145 = scmp.le.s32.totalorder 2, %s25
      // Predicated region
      $region102: #{tpu_custom_call.1} parent=5 // pred_check
        %p2146 = pneg %p2145
      $region103: #{tpu_custom_call.1} parent=5 // pred_check_branch
        %2148 = sbr.rel (%p2146) target = $region105
      $region104: #{tpu_custom_call.1} parent=5 // pred_region
        %s2149 = ssub.s32 %s25, 2
      $region105: #{tpu_custom_call.1} parent=5 // pred_fallthru
        _
    $region6: #{tpu_custom_call.1} parent=1 // loop_footer
      %s29 = sadd.s32 1, %s25
    $region7: #{tpu_custom_call.1} parent=1 // loop_footer_branch
      %24 = sbr.rel target = $region3
    $region8: #{tpu_custom_call.1} parent=1 // loop_exit
      _
    %2150 = vsyncpa [#allocation5], 1
    %s2151 = scalar_lea.sflag [#allocation5], 1
    %2152 = vsyncpa %s2151, 1
    %2153 = vsyncpa [#allocation8], 1
    %s2154 = scalar_lea.sflag [#allocation8], 1
    %2155 = vsyncpa %s2154, 1
    %2156 = vsyncpa [#allocation11], 1
    %s2157 = scalar_lea.sflag [#allocation11], 1
    %2158 = vsyncpa %s2157, 1
    %2159 = vsyncpa [#allocation6], 1
    %s2160 = scalar_lea.sflag [#allocation6], 1
    %2161 = vsyncpa %s2160, 1
    %2162 = vsyncpa [#allocation14], 1

</llo_original>
